<compile_context>
chip_gen: v6e
topology: v6e:2x2x1
jax: 0.10.0
libtpu: 0.0.40
codegen_flags: <defaults>
</compile_context>

<pallas_src>
import jax
import jax.numpy as jnp
from jax import lax
from jax.experimental import pallas as pl
from jax.experimental.pallas import tpu as pltpu


# ----------------------------------------------------------------------------
# Fused kernel: whole ChebSubNet forward (all layers) for one batch element.
# ----------------------------------------------------------------------------
def _make_chebsubnet_kernel(Ks):
    """Build the fused ChebSubNet kernel for a static tuple of Chebyshev orders."""
    num_layers = len(Ks)

    def kernel(l_ref, x_ref, *rest):
        # rest = [w_0, b_0, g_0, beta_0, ..., w_{L-1}, b_{L-1}, g_{L-1}, beta_{L-1},
        #         o_ref, z_scratch]
        param_refs = rest[:4 * num_layers]
        o_ref = rest[4 * num_layers]
        z_ref = rest[4 * num_layers + 1]

        lap = l_ref[...]          # [N, N] graph Laplacian (batch invariant)
        act = x_ref[0]            # [N, C_in] features of this batch element

        for i in range(num_layers):
            w_ref, b_ref, g_ref, be_ref = param_refs[4 * i:4 * i + 4]
            K = Ks[i] + 1
            C = act.shape[-1]

            # Chebyshev recurrence applied directly to the activations
            # (T_0 @ x == x, so no identity matmul). Results are laid out
            # side by side in the VMEM Z-slab: Z[:, k*C:(k+1)*C] = T_k @ x.
            z_ref[:, 0:C] = act
            z_prev2 = act
            z_prev1 = act
            if K >= 2:
                z_prev1 = jnp.dot(lap, act, preferred_element_type=jnp.float32)
                z_ref[:, C:2 * C] = z_prev1
            for k in range(2, K):
                z_new = (2.0 * jnp.dot(lap, z_prev1,
                                       preferred_element_type=jnp.float32)
                         - z_prev2)
                z_ref[:, k * C:(k + 1) * C] = z_new
                z_prev2, z_prev1 = z_prev1, z_new

            # Single MXU contraction over the fused (k, c) axis:
            # [N, K*C] @ [K*C, D]   (K*C == 128 for the demo layers).
            kc = K * C
            y = jnp.dot(z_ref[:, 0:kc], w_ref[...],
                        preferred_element_type=jnp.float32) + b_ref[...]

            # TODO(synk): SwitchNorm1d(using_bn=False) modeled as affine
            # channel layer-norm; fused with ReLU.
            mean = jnp.mean(y, axis=-1, keepdims=True)
            var = jnp.mean((y - mean) ** 2, axis=-1, keepdims=True)
            yn = (y - mean) * lax.rsqrt(var + 1e-5)
            act = jnp.maximum(yn * g_ref[...] + be_ref[...], 0.0)

        o_ref[0] = act.astype(o_ref.dtype)

    return kernel


def chebsubnet_forward(laplacian, x, params, Ks):
    """laplacian: [N, N]; x: [B, N, C_in];
    params: list of (w[K+1, C, D], bias[1, D], gamma[1, D], beta[1, D])."""
    B, n, c_in = x.shape
    d_last = params[-1][0].shape[-1]
    max_kc = max(w.shape[0] * w.shape[1] for (w, _, _, _) in params)

    in_specs = [
        pl.BlockSpec((n, n), lambda b: (0, 0)),            # L (batch invariant)
        pl.BlockSpec((1, n, c_in), lambda b: (b, 0, 0)),   # features for batch b
    ]
    args = [laplacian, x]
    for (w, bias, gamma, beta) in params:
        K1, C, D = w.shape
        in_specs += [
            pl.BlockSpec((K1 * C, D), lambda b: (0, 0)),   # W reshaped [K*C, D]
            pl.BlockSpec((1, D), lambda b: (0, 0)),        # bias
            pl.BlockSpec((1, D), lambda b: (0, 0)),        # gamma
            pl.BlockSpec((1, D), lambda b: (0, 0)),        # beta
        ]
        args += [w.reshape(K1 * C, D), bias, gamma, beta]

    return pl.pallas_call(
        _make_chebsubnet_kernel(tuple(Ks)),
        out_shape=jax.ShapeDtypeStruct((B, n, d_last), jnp.float32),
        grid_spec=pltpu.PrefetchScalarGridSpec(
            num_scalar_prefetch=0,
            grid=(B,),
            in_specs=in_specs,
            out_specs=pl.BlockSpec((1, n, d_last), lambda b: (b, 0, 0)),
            scratch_shapes=[pltpu.VMEM((n, max_kc), jnp.float32)]),
        compiler_params=pltpu.CompilerParams(
            dimension_semantics=("parallel",)),   # one batch per TC on v7x
    )(*args)


# ----------------------------------------------------------------------------
# Plain-JAX glue: graph Laplacian + parameter setup + module forward.
# ----------------------------------------------------------------------------
def remove_self_loop(graph):
    n = graph.shape[0]
    return graph * (1.0 - jnp.eye(n, dtype=graph.dtype))


def get_laplacian(graph, normalize=True):
    n = graph.shape[0]
    if normalize:
        deg = jnp.sum(graph, axis=-1)
        # Guard isolated nodes (PyTorch would produce inf/NaN here).
        d = jnp.where(deg > 0.0, lax.rsqrt(jnp.maximum(deg, 1e-12)), 0.0)
        D = jnp.diag(d)
        return jnp.eye(n, dtype=graph.dtype) - D @ graph @ D
    return jnp.diag(jnp.sum(graph, axis=-1)) - graph


def init_params(key, channels, Ks):
    """Deterministic synthetic params mirroring ChebConv / SwitchNorm1d shapes."""
    params = []
    for i in range(1, len(channels)):
        in_c, out_c, K = channels[i - 1], channels[i], Ks[i - 1] + 1
        key, wk = jax.random.split(key)
        # xavier_normal_ over torch shape [K, 1, in_c, out_c]
        fan_in = 1 * in_c * out_c
        fan_out = K * in_c * out_c
        std = (2.0 / (fan_in + fan_out)) ** 0.5
        w = std * jax.random.normal(wk, (K, in_c, out_c), dtype=jnp.float32)
        b = jnp.zeros((1, out_c), dtype=jnp.float32)
        gamma = jnp.ones((1, out_c), dtype=jnp.float32)
        beta = jnp.zeros((1, out_c), dtype=jnp.float32)
        params.append((w, b, gamma, beta))
    return params


def chebnet_forward(input_data, params, Ks):
    graph = input_data["graph"][0]                    # [N, N]
    source = input_data["flow_d0_x"]                  # [B, N, SRC_len, C]
    target = input_data["flow_y"]                     # [B, N, TRG_len, ...]
    B, N, SRC_len, C = source.shape
    TRG_len = target.shape[2]

    x = source.reshape(B, N, SRC_len * C)             # [B, N, C_in]
    L = get_laplacian(remove_self_loop(graph), normalize=True)

    out = chebsubnet_forward(L, x, params, Ks)        # [B, N, D_last]
    predict = out.reshape(B, N, TRG_len, -1)
    return predict, target


if __name__ == "__main__":
    key = jax.random.PRNGKey(0)
    B, N, SRC_len, C_in = 2, 16, 8, 4
    TRG_len, C_trg = 8, 2
    channels = [SRC_len * C_in, 32, TRG_len * C_trg]  # [32, 32, 16]
    Ks = [3, 3]

    k1, k2, k3, kp = jax.random.split(key, 4)
    adj = jax.random.uniform(k1, (N, N), dtype=jnp.float32, minval=0.1, maxval=1.0)
    adj = 0.5 * (adj + adj.T)
    graph = adj[None]                                  # dict holds batched graph; forward takes [0]
    source = jax.random.normal(k2, (B, N, SRC_len, C_in), dtype=jnp.float32)
    target = jax.random.normal(k3, (B, N, TRG_len, C_trg), dtype=jnp.float32)

    params = init_params(kp, channels, Ks)
    input_data = {"graph": graph, "flow_d0_x": source, "flow_y": target}

    predict, tgt = chebnet_forward(input_data, params, Ks)
    jax.block_until_ready(predict)
    assert predict.shape == (B, N, TRG_len, channels[-1] // TRG_len)
    assert bool(jnp.all(jnp.isfinite(predict)))
    print("KERNEL_OK")
</pallas_src>

<mosaic_0001>
module attributes {stable_mosaic.version = 11 : i64} {
  func.func @kernel(%arg0: i32, %arg1: memref<16x16xf32, #tpu.memory_space<vmem>>, %arg2: memref<1x16x32xf32, #tpu.memory_space<vmem>>, %arg3: memref<128x32xf32, #tpu.memory_space<vmem>>, %arg4: memref<1x32xf32, #tpu.memory_space<vmem>>, %arg5: memref<1x32xf32, #tpu.memory_space<vmem>>, %arg6: memref<1x32xf32, #tpu.memory_space<vmem>>, %arg7: memref<128x16xf32, #tpu.memory_space<vmem>>, %arg8: memref<1x16xf32, #tpu.memory_space<vmem>>, %arg9: memref<1x16xf32, #tpu.memory_space<vmem>>, %arg10: memref<1x16xf32, #tpu.memory_space<vmem>>, %arg11: memref<1x16x16xf32, #tpu.memory_space<vmem>>, %arg12: memref<16x128xf32, #tpu.memory_space<vmem>>) attributes {dimension_semantics = [#tpu.dimension_semantics<parallel>], iteration_bounds = array<i64: 2>, scalar_prefetch = 0 : i64, scratch_operands = 1 : i64, tpu.core_type = #tpu.core_type<tc>, window_params = [{pipeline_mode = #tpu.pipeline_mode<synchronous>, transform_indices = @transform_0, window_bounds = array<i64: 16, 16>}, {transform_indices = @transform_1, window_bounds = array<i64: 1, 16, 32>}, {pipeline_mode = #tpu.pipeline_mode<synchronous>, transform_indices = @transform_2, window_bounds = array<i64: 128, 32>}, {pipeline_mode = #tpu.pipeline_mode<synchronous>, transform_indices = @transform_3, window_bounds = array<i64: 1, 32>}, {pipeline_mode = #tpu.pipeline_mode<synchronous>, transform_indices = @transform_4, window_bounds = array<i64: 1, 32>}, {pipeline_mode = #tpu.pipeline_mode<synchronous>, transform_indices = @transform_5, window_bounds = array<i64: 1, 32>}, {pipeline_mode = #tpu.pipeline_mode<synchronous>, transform_indices = @transform_6, window_bounds = array<i64: 128, 16>}, {pipeline_mode = #tpu.pipeline_mode<synchronous>, transform_indices = @transform_7, window_bounds = array<i64: 1, 16>}, {pipeline_mode = #tpu.pipeline_mode<synchronous>, transform_indices = @transform_8, window_bounds = array<i64: 1, 16>}, {pipeline_mode = #tpu.pipeline_mode<synchronous>, transform_indices = @transform_9, window_bounds = array<i64: 1, 16>}, {transform_indices = @transform_10, window_bounds = array<i64: 1, 16, 16>}]} {
    %c0 = arith.constant 0 : index
    %c0_0 = arith.constant 0 : index
    %0 = vector.load %arg1[%c0, %c0_0] : memref<16x16xf32, #tpu.memory_space<vmem>>, vector<16x16xf32>
    %c0_1 = arith.constant 0 : index
    %c0_2 = arith.constant 0 : index
    %c0_3 = arith.constant 0 : index
    %1 = vector.load %arg2[%c0_1, %c0_2, %c0_3] : memref<1x16x32xf32, #tpu.memory_space<vmem>>, vector<1x16x32xf32>
    %2 = vector.shape_cast %1 : vector<1x16x32xf32> to vector<16x32xf32>
    %c0_4 = arith.constant 0 : index
    %c0_5 = arith.constant 0 : index
    %3 = vector.load %arg12[%c0_4, %c0_5] : memref<16x128xf32, #tpu.memory_space<vmem>>, vector<16x32xf32>
    tpu.vector_store %arg12[%c0_4, %c0_5], %2 {strides = array<i32>} : memref<16x128xf32, #tpu.memory_space<vmem>>, vector<16x32xf32>,
    %cst = arith.constant dense<0.000000e+00> : vector<16x32xf32>
    %4 = tpu.matmul %0, %2, %cst {dimension_numbers = #tpu.dot_dimension_numbers<[1], [0], [0], [1], [0, 0, 1, 1], [], []>} : vector<16x16xf32>, vector<16x32xf32>, vector<16x32xf32> -> vector<16x32xf32>
    %c0_6 = arith.constant 0 : index
    %c32 = arith.constant 32 : index
    %5 = vector.load %arg12[%c0_6, %c32] : memref<16x128xf32, #tpu.memory_space<vmem>>, vector<16x32xf32>
    tpu.vector_store %arg12[%c0_6, %c32], %4 {strides = array<i32>} : memref<16x128xf32, #tpu.memory_space<vmem>>, vector<16x32xf32>,
    %cst_7 = arith.constant dense<0.000000e+00> : vector<16x32xf32>
    %6 = tpu.matmul %0, %4, %cst_7 {dimension_numbers = #tpu.dot_dimension_numbers<[1], [0], [0], [1], [0, 0, 1, 1], [], []>} : vector<16x16xf32>, vector<16x32xf32>, vector<16x32xf32> -> vector<16x32xf32>
    %cst_8 = arith.constant 2.000000e+00 : f32
    %7 = vector.broadcast %cst_8 : f32 to vector<16x32xf32>
    %8 = arith.mulf %7, %6 : vector<16x32xf32>
    %9 = arith.subf %8, %2 : vector<16x32xf32>
    %c0_9 = arith.constant 0 : index
    %c64 = arith.constant 64 : index
    %10 = vector.load %arg12[%c0_9, %c64] : memref<16x128xf32, #tpu.memory_space<vmem>>, vector<16x32xf32>
    tpu.vector_store %arg12[%c0_9, %c64], %9 {strides = array<i32>} : memref<16x128xf32, #tpu.memory_space<vmem>>, vector<16x32xf32>,
    %cst_10 = arith.constant dense<0.000000e+00> : vector<16x32xf32>
    %11 = tpu.matmul %0, %9, %cst_10 {dimension_numbers = #tpu.dot_dimension_numbers<[1], [0], [0], [1], [0, 0, 1, 1], [], []>} : vector<16x16xf32>, vector<16x32xf32>, vector<16x32xf32> -> vector<16x32xf32>
    %cst_11 = arith.constant 2.000000e+00 : f32
    %12 = vector.broadcast %cst_11 : f32 to vector<16x32xf32>
    %13 = arith.mulf %12, %11 : vector<16x32xf32>
    %14 = arith.subf %13, %4 : vector<16x32xf32>
    %c0_12 = arith.constant 0 : index
    %c96 = arith.constant 96 : index
    %15 = vector.load %arg12[%c0_12, %c96] : memref<16x128xf32, #tpu.memory_space<vmem>>, vector<16x32xf32>
    tpu.vector_store %arg12[%c0_12, %c96], %14 {strides = array<i32>} : memref<16x128xf32, #tpu.memory_space<vmem>>, vector<16x32xf32>,
    %c0_13 = arith.constant 0 : index
    %c0_14 = arith.constant 0 : index
    %16 = vector.load %arg12[%c0_13, %c0_14] : memref<16x128xf32, #tpu.memory_space<vmem>>, vector<16x128xf32>
    %c0_15 = arith.constant 0 : index
    %c0_16 = arith.constant 0 : index
    %17 = vector.load %arg3[%c0_15, %c0_16] : memref<128x32xf32, #tpu.memory_space<vmem>>, vector<128x32xf32>
    %cst_17 = arith.constant dense<0.000000e+00> : vector<16x32xf32>
    %18 = tpu.matmul %16, %17, %cst_17 {dimension_numbers = #tpu.dot_dimension_numbers<[1], [0], [0], [1], [0, 0, 1, 1], [], []>} : vector<16x128xf32>, vector<128x32xf32>, vector<16x32xf32> -> vector<16x32xf32>
    %c0_18 = arith.constant 0 : index
    %c0_19 = arith.constant 0 : index
    %19 = vector.load %arg4[%c0_18, %c0_19] : memref<1x32xf32, #tpu.memory_space<vmem>>, vector<1x32xf32>
    %20 = vector.broadcast %19 : vector<1x32xf32> to vector<16x32xf32>
    %21 = arith.addf %18, %20 : vector<16x32xf32>
    %cst_20 = arith.constant dense<0.000000e+00> : vector<16xf32>
    %22 = vector.multi_reduction <add>, %21, %cst_20 [1] : vector<16x32xf32> to vector<16xf32>
    %23 = vector.shape_cast %22 : vector<16xf32> to vector<16x1xf32>
    %cst_21 = arith.constant 3.200000e+01 : f32
    %24 = vector.broadcast %cst_21 : f32 to vector<16x1xf32>
    %25 = arith.divf %23, %24 : vector<16x1xf32>
    %26 = vector.broadcast %25 : vector<16x1xf32> to vector<16x32xf32>
    %27 = arith.subf %21, %26 : vector<16x32xf32>
    %28 = arith.mulf %27, %27 : vector<16x32xf32>
    %cst_22 = arith.constant dense<0.000000e+00> : vector<16xf32>
    %29 = vector.multi_reduction <add>, %28, %cst_22 [1] : vector<16x32xf32> to vector<16xf32>
    %30 = vector.shape_cast %29 : vector<16xf32> to vector<16x1xf32>
    %cst_23 = arith.constant 3.200000e+01 : f32
    %31 = vector.broadcast %cst_23 : f32 to vector<16x1xf32>
    %32 = arith.divf %30, %31 : vector<16x1xf32>
    %33 = vector.broadcast %25 : vector<16x1xf32> to vector<16x32xf32>
    %34 = arith.subf %21, %33 : vector<16x32xf32>
    %cst_24 = arith.constant 9.99999974E-6 : f32
    %35 = vector.broadcast %cst_24 : f32 to vector<16x1xf32>
    %36 = arith.addf %32, %35 : vector<16x1xf32>
    %37 = math.rsqrt %36 : vector<16x1xf32>
    %38 = vector.broadcast %37 : vector<16x1xf32> to vector<16x32xf32>
    %39 = arith.mulf %34, %38 : vector<16x32xf32>
    %c0_25 = arith.constant 0 : index
    %c0_26 = arith.constant 0 : index
    %40 = vector.load %arg5[%c0_25, %c0_26] : memref<1x32xf32, #tpu.memory_space<vmem>>, vector<1x32xf32>
    %41 = vector.broadcast %40 : vector<1x32xf32> to vector<16x32xf32>
    %42 = arith.mulf %39, %41 : vector<16x32xf32>
    %c0_27 = arith.constant 0 : index
    %c0_28 = arith.constant 0 : index
    %43 = vector.load %arg6[%c0_27, %c0_28] : memref<1x32xf32, #tpu.memory_space<vmem>>, vector<1x32xf32>
    %44 = vector.broadcast %43 : vector<1x32xf32> to vector<16x32xf32>
    %45 = arith.addf %42, %44 : vector<16x32xf32>
    %cst_29 = arith.constant 0.000000e+00 : f32
    %46 = vector.broadcast %cst_29 : f32 to vector<16x32xf32>
    %47 = arith.maximumf %45, %46 : vector<16x32xf32>
    %c0_30 = arith.constant 0 : index
    %c0_31 = arith.constant 0 : index
    %48 = vector.load %arg12[%c0_30, %c0_31] : memref<16x128xf32, #tpu.memory_space<vmem>>, vector<16x32xf32>
    tpu.vector_store %arg12[%c0_30, %c0_31], %47 {strides = array<i32>} : memref<16x128xf32, #tpu.memory_space<vmem>>, vector<16x32xf32>,
    %cst_32 = arith.constant dense<0.000000e+00> : vector<16x32xf32>
    %49 = tpu.matmul %0, %47, %cst_32 {dimension_numbers = #tpu.dot_dimension_numbers<[1], [0], [0], [1], [0, 0, 1, 1], [], []>} : vector<16x16xf32>, vector<16x32xf32>, vector<16x32xf32> -> vector<16x32xf32>
    %c0_33 = arith.constant 0 : index
    %c32_34 = arith.constant 32 : index
    %50 = vector.load %arg12[%c0_33, %c32_34] : memref<16x128xf32, #tpu.memory_space<vmem>>, vector<16x32xf32>
    tpu.vector_store %arg12[%c0_33, %c32_34], %49 {strides = array<i32>} : memref<16x128xf32, #tpu.memory_space<vmem>>, vector<16x32xf32>,
    %cst_35 = arith.constant dense<0.000000e+00> : vector<16x32xf32>
    %51 = tpu.matmul %0, %49, %cst_35 {dimension_numbers = #tpu.dot_dimension_numbers<[1], [0], [0], [1], [0, 0, 1, 1], [], []>} : vector<16x16xf32>, vector<16x32xf32>, vector<16x32xf32> -> vector<16x32xf32>
    %cst_36 = arith.constant 2.000000e+00 : f32
    %52 = vector.broadcast %cst_36 : f32 to vector<16x32xf32>
    %53 = arith.mulf %52, %51 : vector<16x32xf32>
    %54 = arith.subf %53, %47 : vector<16x32xf32>
    %c0_37 = arith.constant 0 : index
    %c64_38 = arith.constant 64 : index
    %55 = vector.load %arg12[%c0_37, %c64_38] : memref<16x128xf32, #tpu.memory_space<vmem>>, vector<16x32xf32>
    tpu.vector_store %arg12[%c0_37, %c64_38], %54 {strides = array<i32>} : memref<16x128xf32, #tpu.memory_space<vmem>>, vector<16x32xf32>,
    %cst_39 = arith.constant dense<0.000000e+00> : vector<16x32xf32>
    %56 = tpu.matmul %0, %54, %cst_39 {dimension_numbers = #tpu.dot_dimension_numbers<[1], [0], [0], [1], [0, 0, 1, 1], [], []>} : vector<16x16xf32>, vector<16x32xf32>, vector<16x32xf32> -> vector<16x32xf32>
    %cst_40 = arith.constant 2.000000e+00 : f32
    %57 = vector.broadcast %cst_40 : f32 to vector<16x32xf32>
    %58 = arith.mulf %57, %56 : vector<16x32xf32>
    %59 = arith.subf %58, %49 : vector<16x32xf32>
    %c0_41 = arith.constant 0 : index
    %c96_42 = arith.constant 96 : index
    %60 = vector.load %arg12[%c0_41, %c96_42] : memref<16x128xf32, #tpu.memory_space<vmem>>, vector<16x32xf32>
    tpu.vector_store %arg12[%c0_41, %c96_42], %59 {strides = array<i32>} : memref<16x128xf32, #tpu.memory_space<vmem>>, vector<16x32xf32>,
    %c0_43 = arith.constant 0 : index
    %c0_44 = arith.constant 0 : index
    %61 = vector.load %arg12[%c0_43, %c0_44] : memref<16x128xf32, #tpu.memory_space<vmem>>, vector<16x128xf32>
    %c0_45 = arith.constant 0 : index
    %c0_46 = arith.constant 0 : index
    %62 = vector.load %arg7[%c0_45, %c0_46] : memref<128x16xf32, #tpu.memory_space<vmem>>, vector<128x16xf32>
    %cst_47 = arith.constant dense<0.000000e+00> : vector<16x16xf32>
    %63 = tpu.matmul %61, %62, %cst_47 {dimension_numbers = #tpu.dot_dimension_numbers<[1], [0], [0], [1], [0, 0, 1, 1], [], []>} : vector<16x128xf32>, vector<128x16xf32>, vector<16x16xf32> -> vector<16x16xf32>
    %c0_48 = arith.constant 0 : index
    %c0_49 = arith.constant 0 : index
    %64 = vector.load %arg8[%c0_48, %c0_49] : memref<1x16xf32, #tpu.memory_space<vmem>>, vector<1x16xf32>
    %65 = vector.broadcast %64 : vector<1x16xf32> to vector<16x16xf32>
    %66 = arith.addf %63, %65 : vector<16x16xf32>
    %cst_50 = arith.constant dense<0.000000e+00> : vector<16xf32>
    %67 = vector.multi_reduction <add>, %66, %cst_50 [1] : vector<16x16xf32> to vector<16xf32>
    %68 = vector.shape_cast %67 : vector<16xf32> to vector<16x1xf32>
    %cst_51 = arith.constant 1.600000e+01 : f32
    %69 = vector.broadcast %cst_51 : f32 to vector<16x1xf32>
    %70 = arith.divf %68, %69 : vector<16x1xf32>
    %71 = vector.broadcast %70 : vector<16x1xf32> to vector<16x16xf32>
    %72 = arith.subf %66, %71 : vector<16x16xf32>
    %73 = arith.mulf %72, %72 : vector<16x16xf32>
    %cst_52 = arith.constant dense<0.000000e+00> : vector<16xf32>
    %74 = vector.multi_reduction <add>, %73, %cst_52 [1] : vector<16x16xf32> to vector<16xf32>
    %75 = vector.shape_cast %74 : vector<16xf32> to vector<16x1xf32>
    %cst_53 = arith.constant 1.600000e+01 : f32
    %76 = vector.broadcast %cst_53 : f32 to vector<16x1xf32>
    %77 = arith.divf %75, %76 : vector<16x1xf32>
    %78 = vector.broadcast %70 : vector<16x1xf32> to vector<16x16xf32>
    %79 = arith.subf %66, %78 : vector<16x16xf32>
    %cst_54 = arith.constant 9.99999974E-6 : f32
    %80 = vector.broadcast %cst_54 : f32 to vector<16x1xf32>
    %81 = arith.addf %77, %80 : vector<16x1xf32>
    %82 = math.rsqrt %81 : vector<16x1xf32>
    %83 = vector.broadcast %82 : vector<16x1xf32> to vector<16x16xf32>
    %84 = arith.mulf %79, %83 : vector<16x16xf32>
    %c0_55 = arith.constant 0 : index
    %c0_56 = arith.constant 0 : index
    %85 = vector.load %arg9[%c0_55, %c0_56] : memref<1x16xf32, #tpu.memory_space<vmem>>, vector<1x16xf32>
    %86 = vector.broadcast %85 : vector<1x16xf32> to vector<16x16xf32>
    %87 = arith.mulf %84, %86 : vector<16x16xf32>
    %c0_57 = arith.constant 0 : index
    %c0_58 = arith.constant 0 : index
    %88 = vector.load %arg10[%c0_57, %c0_58] : memref<1x16xf32, #tpu.memory_space<vmem>>, vector<1x16xf32>
    %89 = vector.broadcast %88 : vector<1x16xf32> to vector<16x16xf32>
    %90 = arith.addf %87, %89 : vector<16x16xf32>
    %cst_59 = arith.constant 0.000000e+00 : f32
    %91 = vector.broadcast %cst_59 : f32 to vector<16x16xf32>
    %92 = arith.maximumf %90, %91 : vector<16x16xf32>
    %c0_60 = arith.constant 0 : index
    %c0_61 = arith.constant 0 : index
    %c0_62 = arith.constant 0 : index
    %93 = vector.load %arg11[%c0_60, %c0_61, %c0_62] : memref<1x16x16xf32, #tpu.memory_space<vmem>>, vector<1x16x16xf32>
    %94 = vector.shape_cast %93 : vector<1x16x16xf32> to vector<16x16xf32>
    %95 = vector.shape_cast %92 : vector<16x16xf32> to vector<1x16x16xf32>
    tpu.vector_store %arg11[%c0_60, %c0_61, %c0_62], %95 {strides = array<i32>} : memref<1x16x16xf32, #tpu.memory_space<vmem>>, vector<1x16x16xf32>,
    return
  }
  func.func @transform_0(%arg0: i32) -> (i32, i32) {
    %c0_i32 = arith.constant 0 : i32
    %c0_i32_0 = arith.constant 0 : i32
    %c0_i32_1 = arith.constant 0 : i32
    return %c0_i32, %c0_i32_0 : i32, i32
  }
  func.func @transform_1(%arg0: i32) -> (i32, i32, i32) {
    %c0_i32 = arith.constant 0 : i32
    %c0_i32_0 = arith.constant 0 : i32
    %c0_i32_1 = arith.constant 0 : i32
    return %arg0, %c0_i32, %c0_i32_0 : i32, i32, i32
  }
  func.func @transform_2(%arg0: i32) -> (i32, i32) {
    %c0_i32 = arith.constant 0 : i32
    %c0_i32_0 = arith.constant 0 : i32
    %c0_i32_1 = arith.constant 0 : i32
    return %c0_i32, %c0_i32_0 : i32, i32
  }
  func.func @transform_3(%arg0: i32) -> (i32, i32) {
    %c0_i32 = arith.constant 0 : i32
    %c0_i32_0 = arith.constant 0 : i32
    %c0_i32_1 = arith.constant 0 : i32
    return %c0_i32, %c0_i32_0 : i32, i32
  }
  func.func @transform_4(%arg0: i32) -> (i32, i32) {
    %c0_i32 = arith.constant 0 : i32
    %c0_i32_0 = arith.constant 0 : i32
    %c0_i32_1 = arith.constant 0 : i32
    return %c0_i32, %c0_i32_0 : i32, i32
  }
  func.func @transform_5(%arg0: i32) -> (i32, i32) {
    %c0_i32 = arith.constant 0 : i32
    %c0_i32_0 = arith.constant 0 : i32
    %c0_i32_1 = arith.constant 0 : i32
    return %c0_i32, %c0_i32_0 : i32, i32
  }
  func.func @transform_6(%arg0: i32) -> (i32, i32) {
    %c0_i32 = arith.constant 0 : i32
    %c0_i32_0 = arith.constant 0 : i32
    %c0_i32_1 = arith.constant 0 : i32
    return %c0_i32, %c0_i32_0 : i32, i32
  }
  func.func @transform_7(%arg0: i32) -> (i32, i32) {
    %c0_i32 = arith.constant 0 : i32
    %c0_i32_0 = arith.constant 0 : i32
    %c0_i32_1 = arith.constant 0 : i32
    return %c0_i32, %c0_i32_0 : i32, i32
  }
  func.func @transform_8(%arg0: i32) -> (i32, i32) {
    %c0_i32 = arith.constant 0 : i32
    %c0_i32_0 = arith.constant 0 : i32
    %c0_i32_1 = arith.constant 0 : i32
    return %c0_i32, %c0_i32_0 : i32, i32
  }
  func.func @transform_9(%arg0: i32) -> (i32, i32) {
    %c0_i32 = arith.constant 0 : i32
    %c0_i32_0 = arith.constant 0 : i32
    %c0_i32_1 = arith.constant 0 : i32
    return %c0_i32, %c0_i32_0 : i32, i32
  }
  func.func @transform_10(%arg0: i32) -> (i32, i32, i32) {
    %c0_i32 = arith.constant 0 : i32
    %c0_i32_0 = arith.constant 0 : i32
    %c0_i32_1 = arith.constant 0 : i32
    return %arg0, %c0_i32, %c0_i32_0 : i32, i32, i32
  }
}

</mosaic_0001>

<llo_original>
// kernel: tpu_custom_call.1
$region0: #{tpu_custom_call.1}
  #allocation0 [shape = 'u32[]', space=smem, size = 0x4, offset = 0x4, fixed_abs, tag = 'smem constant byte address 0x4 - core index']
  #allocation1 [shape = 'u32[144,128]{1,0:T(1,128)}', space=vmem, size = 0x12000, scoped, tag = 'internal scratch']
  #allocation2 [shape = 'f32[16,128]{1,0:T(8,128)}', space=vmem, size = 0x2000, scoped, tag = 'scratch operand']
  %s0 = inlined_call_operand.vmem [shape: f32[16,16], index: 0, kind: input, shape index: {}]
  %s1 = inlined_call_operand.vmem [shape: f32[2,16,32], index: 1, kind: input, shape index: {}]
  %s2 = inlined_call_operand.vmem [shape: f32[128,32], index: 2, kind: input, shape index: {}]
  %s3 = inlined_call_operand.vmem [shape: f32[1,32], index: 3, kind: input, shape index: {}]
  %s4 = inlined_call_operand.vmem [shape: f32[1,32], index: 4, kind: input, shape index: {}]
  %s5 = inlined_call_operand.vmem [shape: f32[1,32], index: 5, kind: input, shape index: {}]
  %s6 = inlined_call_operand.vmem [shape: f32[128,16], index: 6, kind: input, shape index: {}]
  %s7 = inlined_call_operand.vmem [shape: f32[1,16], index: 7, kind: input, shape index: {}]
  %s8 = inlined_call_operand.vmem [shape: f32[1,16], index: 8, kind: input, shape index: {}]
  %s9 = inlined_call_operand.vmem [shape: f32[1,16], index: 9, kind: input, shape index: {}]
  %s10 = inlined_call_operand.hbm [shape: f32[2,16,16], index: 10, kind: output, shape index: {}]
  %s11 = sld [smem:[#allocation0]]
  $region73: #{tpu_custom_call.1} parent=0
    _
  %s13 = ssub.s32 1, %s11
  %s14 = scalar_select 0, %s13, %s11
  $region1: #{tpu_custom_call.1} parent=0
    #allocation3 [shape = 'u8[16384]{0}', space=vmem, size = 0x4000, scoped, tag = 'output window, operand 0']
    #allocation4 [shape = 's32[2]{0}', space=sflag, size = 0x8, scoped, tag = 'scoped memory for tpu_custom_call.1']
    %15 = vsyncpa [#allocation4], 0
    %s16 = scalar_lea.sflag [#allocation4], 1
    %17 = vsyncpa %s16, 0
    loop: start=0, step=1, limit=4
    $region2: #{tpu_custom_call.1} parent=1 // loop_pre_header
      _
    $region3: #{tpu_custom_call.1} parent=1 // loop_header
      %s19 = sphi 0, %s23
      %p20 = scmp.ge.s32.totalorder %s19, 4
      %s27 = sphi 0, %s27
      %s29 = sphi 0, %s27
      %s30 = sphi 0, %s29
      %s44 = sphi 0, %s30
      %s50 = sphi 0, %s52
      %s53 = sphi 0, %s50
      %s54 = sphi 0, %s53
      %s70 = sphi 0, %s54
      %s74 = sphi 0, %s74
      %s76 = sphi 0, %s74
      %s77 = sphi 0, %s76
      %s91 = sphi 0, %s77
      %s95 = sphi 0, %s95
      %s97 = sphi 0, %s95
      %s98 = sphi 0, %s97
      %s112 = sphi 0, %s98
      %s116 = sphi 0, %s116
      %s118 = sphi 0, %s116
      %s119 = sphi 0, %s118
      %s133 = sphi 0, %s119
      %s137 = sphi 0, %s137
      %s139 = sphi 0, %s137
      %s140 = sphi 0, %s139
      %s154 = sphi 0, %s140
      %s158 = sphi 0, %s158
      %s160 = sphi 0, %s158
      %s161 = sphi 0, %s160
      %s175 = sphi 0, %s161
      %s179 = sphi 0, %s179
      %s181 = sphi 0, %s179
      %s182 = sphi 0, %s181
      %s196 = sphi 0, %s182
      %s200 = sphi 0, %s200
      %s202 = sphi 0, %s200
      %s203 = sphi 0, %s202
      %s217 = sphi 0, %s203
      %s221 = sphi 0, %s221
      %s223 = sphi 0, %s221
      %s224 = sphi 0, %s223
      %s238 = sphi 0, %s224
      %s244 = sphi 0, %s246
      %s247 = sphi 0, %s244
      %s248 = sphi 0, %s247
      %s264 = sphi 0, %s248
    $region4: #{tpu_custom_call.1} parent=1 // loop_header_branch
      %22 = sbr.rel (%p20) target = $region8
    $region5: #{tpu_custom_call.1} parent=1 // loop_body
      %s24 = ssub.s32 %s19, 1
      %s25 = ssub.s32 %s19, 2
      %s26 = sadd.s32 %s19, 1
      %s28 = sadd.s32 %s27, 1
      %p31 = scmp.eq.s32.totalorder %s19, 1
      %p32 = scmp.ne.s32.totalorder %s27, %s29
      %p33 = scmp.eq.s32.totalorder %s19, 0
      %p34 = por %p32, %p33
      %p35 = scmp.ne.s32.totalorder %s27, %s29
      %p36 = scmp.eq.s32.totalorder %s24, 1
      %p37 = por %p35, %p36
      %p38 = scmp.ne.s32.totalorder %s29, %s30
      %p39 = scmp.eq.s32.totalorder %s24, 0
      %p40 = por %p38, %p39
      %p41 = scmp.ne.s32.totalorder %s29, %s30
      %p42 = scmp.eq.s32.totalorder %s25, 1
      %p43 = por %p41, %p42
      %p45 = scmp.ne.s32.totalorder %s30, %s44
      %p46 = scmp.eq.s32.totalorder %s25, 0
      %p47 = por %p45, %p46
      %s48 = ssub.s32 %s19, %s26
      %p49 = scmp.eq.s32.totalorder %s48, 0
      %s51 = sadd.s32 %s50, 1
      %s52 = scalar_select %p49, %s50, %s51
      %p55 = pneg %p49
      %p56 = scmp.eq.s32.totalorder %s19, 1
      %p57 = por %p55, %p56
      %p58 = scmp.ne.s32.totalorder %s50, %s53
      %p59 = scmp.eq.s32.totalorder %s19, 0
      %p60 = por %p58, %p59
      %p61 = scmp.ne.s32.totalorder %s50, %s53
      %p62 = scmp.eq.s32.totalorder %s24, 1
      %p63 = por %p61, %p62
      %p64 = scmp.ne.s32.totalorder %s53, %s54
      %p65 = scmp.eq.s32.totalorder %s24, 0
      %p66 = por %p64, %p65
      %p67 = scmp.ne.s32.totalorder %s53, %s54
      %p68 = scmp.eq.s32.totalorder %s25, 1
      %p69 = por %p67, %p68
      %p71 = scmp.ne.s32.totalorder %s54, %s70
      %p72 = scmp.eq.s32.totalorder %s25, 0
      %p73 = por %p71, %p72
      %s75 = sadd.s32 %s74, 1
      %p78 = scmp.eq.s32.totalorder %s19, 1
      %p79 = scmp.ne.s32.totalorder %s74, %s76
      %p80 = scmp.eq.s32.totalorder %s19, 0
      %p81 = por %p79, %p80
      %p82 = scmp.ne.s32.totalorder %s74, %s76
      %p83 = scmp.eq.s32.totalorder %s24, 1
      %p84 = por %p82, %p83
      %p85 = scmp.ne.s32.totalorder %s76, %s77
      %p86 = scmp.eq.s32.totalorder %s24, 0
      %p87 = por %p85, %p86
      %p88 = scmp.ne.s32.totalorder %s76, %s77
      %p89 = scmp.eq.s32.totalorder %s25, 1
      %p90 = por %p88, %p89
      %p92 = scmp.ne.s32.totalorder %s77, %s91
      %p93 = scmp.eq.s32.totalorder %s25, 0
      %p94 = por %p92, %p93
      %s96 = sadd.s32 %s95, 1
      %p99 = scmp.eq.s32.totalorder %s19, 1
      %p100 = scmp.ne.s32.totalorder %s95, %s97
      %p101 = scmp.eq.s32.totalorder %s19, 0
      %p102 = por %p100, %p101
      %p103 = scmp.ne.s32.totalorder %s95, %s97
      %p104 = scmp.eq.s32.totalorder %s24, 1
      %p105 = por %p103, %p104
      %p106 = scmp.ne.s32.totalorder %s97, %s98
      %p107 = scmp.eq.s32.totalorder %s24, 0
      %p108 = por %p106, %p107
      %p109 = scmp.ne.s32.totalorder %s97, %s98
      %p110 = scmp.eq.s32.totalorder %s25, 1
      %p111 = por %p109, %p110
      %p113 = scmp.ne.s32.totalorder %s98, %s112
      %p114 = scmp.eq.s32.totalorder %s25, 0
      %p115 = por %p113, %p114
      %s117 = sadd.s32 %s116, 1
      %p120 = scmp.eq.s32.totalorder %s19, 1
      %p121 = scmp.ne.s32.totalorder %s116, %s118
      %p122 = scmp.eq.s32.totalorder %s19, 0
      %p123 = por %p121, %p122
      %p124 = scmp.ne.s32.totalorder %s116, %s118
      %p125 = scmp.eq.s32.totalorder %s24, 1
      %p126 = por %p124, %p125
      %p127 = scmp.ne.s32.totalorder %s118, %s119
      %p128 = scmp.eq.s32.totalorder %s24, 0
      %p129 = por %p127, %p128
      %p130 = scmp.ne.s32.totalorder %s118, %s119
      %p131 = scmp.eq.s32.totalorder %s25, 1
      %p132 = por %p130, %p131
      %p134 = scmp.ne.s32.totalorder %s119, %s133
      %p135 = scmp.eq.s32.totalorder %s25, 0
      %p136 = por %p134, %p135
      %s138 = sadd.s32 %s137, 1
      %p141 = scmp.eq.s32.totalorder %s19, 1
      %p142 = scmp.ne.s32.totalorder %s137, %s139
      %p143 = scmp.eq.s32.totalorder %s19, 0
      %p144 = por %p142, %p143
      %p145 = scmp.ne.s32.totalorder %s137, %s139
      %p146 = scmp.eq.s32.totalorder %s24, 1
      %p147 = por %p145, %p146
      %p148 = scmp.ne.s32.totalorder %s139, %s140
      %p149 = scmp.eq.s32.totalorder %s24, 0
      %p150 = por %p148, %p149
      %p151 = scmp.ne.s32.totalorder %s139, %s140
      %p152 = scmp.eq.s32.totalorder %s25, 1
      %p153 = por %p151, %p152
      %p155 = scmp.ne.s32.totalorder %s140, %s154
      %p156 = scmp.eq.s32.totalorder %s25, 0
      %p157 = por %p155, %p156
      %s159 = sadd.s32 %s158, 1
      %p162 = scmp.eq.s32.totalorder %s19, 1
      %p163 = scmp.ne.s32.totalorder %s158, %s160
      %p164 = scmp.eq.s32.totalorder %s19, 0
      %p165 = por %p163, %p164
      %p166 = scmp.ne.s32.totalorder %s158, %s160
      %p167 = scmp.eq.s32.totalorder %s24, 1
      %p168 = por %p166, %p167
      %p169 = scmp.ne.s32.totalorder %s160, %s161
      %p170 = scmp.eq.s32.totalorder %s24, 0
      %p171 = por %p169, %p170
      %p172 = scmp.ne.s32.totalorder %s160, %s161
      %p173 = scmp.eq.s32.totalorder %s25, 1
      %p174 = por %p172, %p173
      %p176 = scmp.ne.s32.totalorder %s161, %s175
      %p177 = scmp.eq.s32.totalorder %s25, 0
      %p178 = por %p176, %p177
      %s180 = sadd.s32 %s179, 1
      %p183 = scmp.eq.s32.totalorder %s19, 1
      %p184 = scmp.ne.s32.totalorder %s179, %s181
      %p185 = scmp.eq.s32.totalorder %s19, 0
      %p186 = por %p184, %p185
      %p187 = scmp.ne.s32.totalorder %s179, %s181
      %p188 = scmp.eq.s32.totalorder %s24, 1
      %p189 = por %p187, %p188
      %p190 = scmp.ne.s32.totalorder %s181, %s182
      %p191 = scmp.eq.s32.totalorder %s24, 0
      %p192 = por %p190, %p191
      %p193 = scmp.ne.s32.totalorder %s181, %s182
      %p194 = scmp.eq.s32.totalorder %s25, 1
      %p195 = por %p193, %p194
      %p197 = scmp.ne.s32.totalorder %s182, %s196
      %p198 = scmp.eq.s32.totalorder %s25, 0
      %p199 = por %p197, %p198
      %s201 = sadd.s32 %s200, 1
      %p204 = scmp.eq.s32.totalorder %s19, 1
      %p205 = scmp.ne.s32.totalorder %s200, %s202
      %p206 = scmp.eq.s32.totalorder %s19, 0
      %p207 = por %p205, %p206
      %p208 = scmp.ne.s32.totalorder %s200, %s202
      %p209 = scmp.eq.s32.totalorder %s24, 1
      %p210 = por %p208, %p209
      %p211 = scmp.ne.s32.totalorder %s202, %s203
      %p212 = scmp.eq.s32.totalorder %s24, 0
      %p213 = por %p211, %p212
      %p214 = scmp.ne.s32.totalorder %s202, %s203
      %p215 = scmp.eq.s32.totalorder %s25, 1
      %p216 = por %p214, %p215
      %p218 = scmp.ne.s32.totalorder %s203, %s217
      %p219 = scmp.eq.s32.totalorder %s25, 0
      %p220 = por %p218, %p219
      %s222 = sadd.s32 %s221, 1
      %p225 = scmp.eq.s32.totalorder %s19, 1
      %p226 = scmp.ne.s32.totalorder %s221, %s223
      %p227 = scmp.eq.s32.totalorder %s19, 0
      %p228 = por %p226, %p227
      %p229 = scmp.ne.s32.totalorder %s221, %s223
      %p230 = scmp.eq.s32.totalorder %s24, 1
      %p231 = por %p229, %p230
      %p232 = scmp.ne.s32.totalorder %s223, %s224
      %p233 = scmp.eq.s32.totalorder %s24, 0
      %p234 = por %p232, %p233
      %p235 = scmp.ne.s32.totalorder %s223, %s224
      %p236 = scmp.eq.s32.totalorder %s25, 1
      %p237 = por %p235, %p236
      %p239 = scmp.ne.s32.totalorder %s224, %s238
      %p240 = scmp.eq.s32.totalorder %s25, 0
      %p241 = por %p239, %p240
      %s242 = ssub.s32 %s19, %s26
      %p243 = scmp.eq.s32.totalorder %s242, 0
      %s245 = sadd.s32 %s244, 1
      %s246 = scalar_select %p243, %s244, %s245
      %p249 = pneg %p243
      %p250 = scmp.eq.s32.totalorder %s19, 1
      %p251 = por %p249, %p250
      %p252 = scmp.ne.s32.totalorder %s244, %s247
      %p253 = scmp.eq.s32.totalorder %s19, 0
      %p254 = por %p252, %p253
      %p255 = scmp.ne.s32.totalorder %s244, %s247
      %p256 = scmp.eq.s32.totalorder %s24, 1
      %p257 = por %p255, %p256
      %p258 = scmp.ne.s32.totalorder %s247, %s248
      %p259 = scmp.eq.s32.totalorder %s24, 0
      %p260 = por %p258, %p259
      %p261 = scmp.ne.s32.totalorder %s247, %s248
      %p262 = scmp.eq.s32.totalorder %s25, 1
      %p263 = por %p261, %p262
      %p265 = scmp.ne.s32.totalorder %s248, %s264
      %p266 = scmp.eq.s32.totalorder %s25, 0
      %p267 = por %p265, %p266
      %p268 = scmp.le.s32.totalorder 1, %s19
      %p269 = scmp.lt.s32.totalorder %s19, 3
      %p270 = pnand %p268, %p269
      %p271 = pneg %p270
      // Predicated region
      $region9: #{tpu_custom_call.1} parent=5 // pred_check
        _
      $region10: #{tpu_custom_call.1} parent=5 // pred_check_branch
        %273 = sbr.rel (%p270) target = $region12
      $region11: #{tpu_custom_call.1} parent=5 // pred_region
        %s274 = ssub.s32 %s19, 1
        // Predicated region
        $region13: #{tpu_custom_call.1} parent=11 // pred_check
          %p275 = pneg %p40
        $region14: #{tpu_custom_call.1} parent=11 // pred_check_branch
          %277 = sbr.rel (%p275) target = $region16
        $region15: #{tpu_custom_call.1} parent=11 // pred_region
          _
        $region16: #{tpu_custom_call.1} parent=11 // pred_fallthru
          _
        // Predicated region
        $region17: #{tpu_custom_call.1} parent=11 // pred_check
          %p278 = pneg %p87
        $region18: #{tpu_custom_call.1} parent=11 // pred_check_branch
          %280 = sbr.rel (%p278) target = $region20
        $region19: #{tpu_custom_call.1} parent=11 // pred_region
          _
        $region20: #{tpu_custom_call.1} parent=11 // pred_fallthru
          _
        // Predicated region
        $region21: #{tpu_custom_call.1} parent=11 // pred_check
          %p281 = pneg %p108
        $region22: #{tpu_custom_call.1} parent=11 // pred_check_branch
          %283 = sbr.rel (%p281) target = $region24
        $region23: #{tpu_custom_call.1} parent=11 // pred_region
          _
        $region24: #{tpu_custom_call.1} parent=11 // pred_fallthru
          _
        // Predicated region
        $region25: #{tpu_custom_call.1} parent=11 // pred_check
          %p284 = pneg %p129
        $region26: #{tpu_custom_call.1} parent=11 // pred_check_branch
          %286 = sbr.rel (%p284) target = $region28
        $region27: #{tpu_custom_call.1} parent=11 // pred_region
          _
        $region28: #{tpu_custom_call.1} parent=11 // pred_fallthru
          _
        // Predicated region
        $region29: #{tpu_custom_call.1} parent=11 // pred_check
          %p287 = pneg %p150
        $region30: #{tpu_custom_call.1} parent=11 // pred_check_branch
          %289 = sbr.rel (%p287) target = $region32
        $region31: #{tpu_custom_call.1} parent=11 // pred_region
          _
        $region32: #{tpu_custom_call.1} parent=11 // pred_fallthru
          _
        // Predicated region
        $region33: #{tpu_custom_call.1} parent=11 // pred_check
          %p290 = pneg %p171
        $region34: #{tpu_custom_call.1} parent=11 // pred_check_branch
          %292 = sbr.rel (%p290) target = $region36
        $region35: #{tpu_custom_call.1} parent=11 // pred_region
          _
        $region36: #{tpu_custom_call.1} parent=11 // pred_fallthru
          _
        // Predicated region
        $region37: #{tpu_custom_call.1} parent=11 // pred_check
          %p293 = pneg %p192
        $region38: #{tpu_custom_call.1} parent=11 // pred_check_branch
          %295 = sbr.rel (%p293) target = $region40
        $region39: #{tpu_custom_call.1} parent=11 // pred_region
          _
        $region40: #{tpu_custom_call.1} parent=11 // pred_fallthru
          _
        // Predicated region
        $region41: #{tpu_custom_call.1} parent=11 // pred_check
          %p296 = pneg %p213
        $region42: #{tpu_custom_call.1} parent=11 // pred_check_branch
          %298 = sbr.rel (%p296) target = $region44
        $region43: #{tpu_custom_call.1} parent=11 // pred_region
          _
        $region44: #{tpu_custom_call.1} parent=11 // pred_fallthru
          _
        // Predicated region
        $region45: #{tpu_custom_call.1} parent=11 // pred_check
          %p299 = pneg %p234
        $region46: #{tpu_custom_call.1} parent=11 // pred_check_branch
          %301 = sbr.rel (%p299) target = $region48
        $region47: #{tpu_custom_call.1} parent=11 // pred_region
          _
        $region48: #{tpu_custom_call.1} parent=11 // pred_fallthru
          _
      $region12: #{tpu_custom_call.1} parent=5 // pred_fallthru
        _
      %p302 = scmp.lt.s32.totalorder %s19, 2
      // Predicated region
      $region49: #{tpu_custom_call.1} parent=5 // pred_check
        %p303 = pneg %p302
      $region50: #{tpu_custom_call.1} parent=5 // pred_check_branch
        %305 = sbr.rel (%p303) target = $region52
      $region51: #{tpu_custom_call.1} parent=5 // pred_region
        // Predicated region
        $region53: #{tpu_custom_call.1} parent=51 // pred_check
          %p306 = pneg %p60
        $region54: #{tpu_custom_call.1} parent=51 // pred_check_branch
          %308 = sbr.rel (%p306) target = $region56
        $region55: #{tpu_custom_call.1} parent=51 // pred_region
          %p309 = scmp.lt.s32.totalorder %s19, 1
          %s310 = scalar_select %p309, %s19, 1
          %s311 = smul.addr %s310, 2
          %s312 = smul.addr %s311, 8
          %s313 = scalar_lea.vmem %s1, %s312
        $region56: #{tpu_custom_call.1} parent=51 // pred_fallthru
          _
      $region52: #{tpu_custom_call.1} parent=5 // pred_fallthru
        _
      %p314 = scmp.le.s32.totalorder 1, %s19
      %p315 = scmp.lt.s32.totalorder %s19, 3
      %p316 = pnand %p314, %p315
      %p317 = pneg %p316
      // Predicated region
      $region57: #{tpu_custom_call.1} parent=5 // pred_check
        _
      $region58: #{tpu_custom_call.1} parent=5 // pred_check_branch
        %319 = sbr.rel (%p316) target = $region60
      $region59: #{tpu_custom_call.1} parent=5 // pred_region
        %s320 = ssub.s32 %s19, 1
        %p321 = pneg %p40
        %p322 = pneg %p37
        %p323 = scmp.lt.s32.totalorder %s24, 1
        %s324 = scalar_select %p323, %s24, 1
        %s325 = smul.addr %s324, 2
        %s326 = smul.addr %s325, 8
        %s327 = scalar_lea.vmem %s1, %s326
        %p328 = pneg %p66
        %p329 = pneg %p63
        %p330 = pneg %p87
        %p331 = pneg %p84
        %p332 = pneg %p108
        %p333 = pneg %p105
        %p334 = pneg %p129
        %p335 = pneg %p126
        %p336 = pneg %p150
        %p337 = pneg %p147
        %p338 = pneg %p171
        %p339 = pneg %p168
        %p340 = pneg %p192
        %p341 = pneg %p189
        %p342 = pneg %p213
        %p343 = pneg %p210
        %p344 = pneg %p234
        %p345 = pneg %p231
        %p346 = pneg %p260
        %p347 = pneg %p257
        %s348 = sand.u32 %s247, 1
        %s349 = scalar_lea.sflag [#allocation4], %s348
        %s350 = sand.u32 %s247, 1
        %s351 = smul.addr %s350, 16
        %s352 = scalar_lea.vmem [#allocation3], %s351
        %p353 = scmp.lt.s32.totalorder %s24, 1
        %s354 = scalar_select %p353, %s24, 1
        %s355 = smul.addr %s354, 2
        %s356 = smul.addr %s355, 8
        %s357 = scalar_lea.vmem %s1, %s356
        %v358 = vld [vmem:[%s0] sm:$0xff]
        %v359 = vld [vmem:[%s0 + $0x8] sm:$0xff]
        %v360 = vld [vmem:[%s357] sm:$0xff]
        %v361 = vld [vmem:[%s357 + $0x8] sm:$0xff]
        %vm362 = vcmask 261120
        %363 = vst.msk [vmem:[#allocation2] sm:$0xff] %vm362, %v360
        %364 = vst.msk [vmem:[#allocation2 + $0x8] sm:$0xff] %vm362, %v361
        %vm365 = vcmask 130048
        %v367 = vsel %vm365, %v358, 0
        %v370 = vsel %vm365, %v359, 0
        %372 = vmatprep.subr.mxu0 0.0
        %373 = vmatpush1.msra.mxu0 0.0
        %374 = vmatprep.subr.mxu0 0.0
        %375 = vmatpush1.msra.mxu0 0.0
        %376 = vmatprep.subr.mxu0 0.0
        %377 = vmatpush1.msra.mxu0 0.0
        %378 = vmatprep.subr.mxu0 0.0
        %379 = vmatpush1.msra.mxu0 0.0
        %380 = vmatprep.subr.mxu0 0.0
        %381 = vmatpush1.msra.mxu0 0.0
        %382 = vmatprep.subr.mxu0 0.0
        %383 = vmatpush1.msra.mxu0 0.0
        %384 = vmatprep.subr.mxu0 0.0
        %385 = vmatpush1.msra.mxu0 0.0
        %386 = vmatprep.subr.mxu0 0.0
        %387 = vmatpush1.msra.mxu0 0.0
        %388 = vmatprep.subr.mxu0 0.0
        %389 = vmatpush1.msra.mxu0 0.0
        %390 = vmatprep.subr.mxu0 0.0
        %391 = vmatpush1.msra.mxu0 0.0
        %392 = vmatprep.subr.mxu0 0.0
        %393 = vmatpush1.msra.mxu0 0.0
        %394 = vmatprep.subr.mxu0 0.0
        %395 = vmatpush1.msra.mxu0 0.0
        %396 = vmatprep.subr.mxu0 0.0
        %397 = vmatpush1.msra.mxu0 0.0
        %398 = vmatprep.subr.mxu0 0.0
        %399 = vmatpush1.msra.mxu0 0.0
        %400 = vmatprep.subr.mxu0 0.0
        %401 = vmatpush1.msra.mxu0 %v361
        %402 = vmatprep.subr.mxu0 0.0
        %403 = vmatpush1.msra.mxu0 %v360
        %404 = vmatprep.subr.mxu0 0.0
        %405 = vmatpush2.msra.mxu0 0.0
        %406 = vmatprep.subr.mxu0 0.0
        %407 = vmatpush2.msra.mxu0 0.0
        %408 = vmatprep.subr.mxu0 0.0
        %409 = vmatpush2.msra.mxu0 0.0
        %410 = vmatprep.subr.mxu0 0.0
        %411 = vmatpush2.msra.mxu0 0.0
        %412 = vmatprep.subr.mxu0 0.0
        %413 = vmatpush2.msra.mxu0 0.0
        %414 = vmatprep.subr.mxu0 0.0
        %415 = vmatpush2.msra.mxu0 0.0
        %416 = vmatprep.subr.mxu0 0.0
        %417 = vmatpush2.msra.mxu0 0.0
        %418 = vmatprep.subr.mxu0 0.0
        %419 = vmatpush2.msra.mxu0 0.0
        %420 = vmatprep.subr.mxu0 0.0
        %421 = vmatpush2.msra.mxu0 0.0
        %422 = vmatprep.subr.mxu0 0.0
        %423 = vmatpush2.msra.mxu0 0.0
        %424 = vmatprep.subr.mxu0 0.0
        %425 = vmatpush2.msra.mxu0 0.0
        %426 = vmatprep.subr.mxu0 0.0
        %427 = vmatpush2.msra.mxu0 0.0
        %428 = vmatprep.subr.mxu0 0.0
        %429 = vmatpush2.msra.mxu0 0.0
        %430 = vmatprep.subr.mxu0 0.0
        %431 = vmatpush2.msra.mxu0 0.0
        %432 = vmatprep.subr.mxu0 0.0
        %433 = vmatpush2.msra.mxu0 0.0
        %434 = vmatprep.subr.mxu0 0.0
        %435 = vmatpush2.msra.mxu0 0.0
        %436 = vmatprep.mubr.f32.mxu0 0.0
        %437 = vmatmul.mubr.f32.gmra.mxu0 %v367
        %v438 = vpop.f32.mrf.mxu0
        %v439 = vadd.f32 0.0, %v438
        %v440 = vpop.f32.mrf.mxu0
        %441 = vmatprep.mubr.f32.mxu0 0.0
        %442 = vmatmul.mubr.f32.gmra.mxu0 %v370
        %v443 = vpop.f32.mrf.mxu0
        %v444 = vadd.f32 0.0, %v443
        %v445 = vpop.f32.mrf.mxu0
        %446 = vdwg.mxu0
        %449 = vrot.lane.b32.xlu0 %v439, 32
        %v450 = vpop.permute.xlu0 %449
        %451 = vrot.lane.b32.xlu0 %v444, 32
        %v452 = vpop.permute.xlu0 %451
        %vm455 = vcmask 523520
        %456 = vst.msk [vmem:[#allocation2] sm:$0xff] %vm455, %v450
        %457 = vst.msk [vmem:[#allocation2 + $0x8] sm:$0xff] %vm455, %v452
        %458 = vmatprep.subr.mxu0 0.0
        %459 = vmatpush1.msra.mxu0 0.0
        %460 = vmatprep.subr.mxu0 0.0
        %461 = vmatpush1.msra.mxu0 0.0
        %462 = vmatprep.subr.mxu0 0.0
        %463 = vmatpush1.msra.mxu0 0.0
        %464 = vmatprep.subr.mxu0 0.0
        %465 = vmatpush1.msra.mxu0 0.0
        %466 = vmatprep.subr.mxu0 0.0
        %467 = vmatpush1.msra.mxu0 0.0
        %468 = vmatprep.subr.mxu0 0.0
        %469 = vmatpush1.msra.mxu0 0.0
        %470 = vmatprep.subr.mxu0 0.0
        %471 = vmatpush1.msra.mxu0 0.0
        %472 = vmatprep.subr.mxu0 0.0
        %473 = vmatpush1.msra.mxu0 0.0
        %474 = vmatprep.subr.mxu0 0.0
        %475 = vmatpush1.msra.mxu0 0.0
        %476 = vmatprep.subr.mxu0 0.0
        %477 = vmatpush1.msra.mxu0 0.0
        %478 = vmatprep.subr.mxu0 0.0
        %479 = vmatpush1.msra.mxu0 0.0
        %480 = vmatprep.subr.mxu0 0.0
        %481 = vmatpush1.msra.mxu0 0.0
        %482 = vmatprep.subr.mxu0 0.0
        %483 = vmatpush1.msra.mxu0 0.0
        %484 = vmatprep.subr.mxu0 0.0
        %485 = vmatpush1.msra.mxu0 0.0
        %486 = vmatprep.subr.mxu0 0.0
        %487 = vmatpush1.msra.mxu0 %v444
        %488 = vmatprep.subr.mxu0 0.0
        %489 = vmatpush1.msra.mxu0 %v439
        %490 = vmatprep.subr.mxu0 0.0
        %491 = vmatpush2.msra.mxu0 0.0
        %492 = vmatprep.subr.mxu0 0.0
        %493 = vmatpush2.msra.mxu0 0.0
        %494 = vmatprep.subr.mxu0 0.0
        %495 = vmatpush2.msra.mxu0 0.0
        %496 = vmatprep.subr.mxu0 0.0
        %497 = vmatpush2.msra.mxu0 0.0
        %498 = vmatprep.subr.mxu0 0.0
        %499 = vmatpush2.msra.mxu0 0.0
        %500 = vmatprep.subr.mxu0 0.0
        %501 = vmatpush2.msra.mxu0 0.0
        %502 = vmatprep.subr.mxu0 0.0
        %503 = vmatpush2.msra.mxu0 0.0
        %504 = vmatprep.subr.mxu0 0.0
        %505 = vmatpush2.msra.mxu0 0.0
        %506 = vmatprep.subr.mxu0 0.0
        %507 = vmatpush2.msra.mxu0 0.0
        %508 = vmatprep.subr.mxu0 0.0
        %509 = vmatpush2.msra.mxu0 0.0
        %510 = vmatprep.subr.mxu0 0.0
        %511 = vmatpush2.msra.mxu0 0.0
        %512 = vmatprep.subr.mxu0 0.0
        %513 = vmatpush2.msra.mxu0 0.0
        %514 = vmatprep.subr.mxu0 0.0
        %515 = vmatpush2.msra.mxu0 0.0
        %516 = vmatprep.subr.mxu0 0.0
        %517 = vmatpush2.msra.mxu0 0.0
        %518 = vmatprep.subr.mxu0 0.0
        %519 = vmatpush2.msra.mxu0 0.0
        %520 = vmatprep.subr.mxu0 0.0
        %521 = vmatpush2.msra.mxu0 0.0
        %522 = vmatprep.mubr.f32.mxu0 0.0
        %523 = vmatmul.mubr.f32.gmra.mxu0 %v367
        %v524 = vpop.f32.mrf.mxu0
        %v525 = vadd.f32 0.0, %v524
        %v526 = vpop.f32.mrf.mxu0
        %527 = vmatprep.mubr.f32.mxu0 0.0
        %528 = vmatmul.mubr.f32.gmra.mxu0 %v370
        %v529 = vpop.f32.mrf.mxu0
        %v530 = vadd.f32 0.0, %v529
        %v531 = vpop.f32.mrf.mxu0
        %532 = vdwg.mxu0
        %v533 = vmul.f32 %v525, 2.0
        %v534 = vmul.f32 %v530, 2.0
        %v535 = vsub.f32 %v533, %v360
        %v536 = vsub.f32 %v534, %v361
        %539 = vrot.lane.b32.xlu0 %v535, 64
        %v540 = vpop.permute.xlu0 %539
        %541 = vrot.lane.b32.xlu0 %v536, 64
        %v542 = vpop.permute.xlu0 %541
        %vm545 = vcmask 785920
        %546 = vst.msk [vmem:[#allocation2] sm:$0xff] %vm545, %v540
        %547 = vst.msk [vmem:[#allocation2 + $0x8] sm:$0xff] %vm545, %v542
        %548 = vmatprep.subr.mxu0 0.0
        %549 = vmatpush1.msra.mxu0 0.0
        %550 = vmatprep.subr.mxu0 0.0
        %551 = vmatpush1.msra.mxu0 0.0
        %552 = vmatprep.subr.mxu0 0.0
        %553 = vmatpush1.msra.mxu0 0.0
        %554 = vmatprep.subr.mxu0 0.0
        %555 = vmatpush1.msra.mxu0 0.0
        %556 = vmatprep.subr.mxu0 0.0
        %557 = vmatpush1.msra.mxu0 0.0
        %558 = vmatprep.subr.mxu0 0.0
        %559 = vmatpush1.msra.mxu0 0.0
        %560 = vmatprep.subr.mxu0 0.0
        %561 = vmatpush1.msra.mxu0 0.0
        %562 = vmatprep.subr.mxu0 0.0
        %563 = vmatpush1.msra.mxu0 0.0
        %564 = vmatprep.subr.mxu0 0.0
        %565 = vmatpush1.msra.mxu0 0.0
        %566 = vmatprep.subr.mxu0 0.0
        %567 = vmatpush1.msra.mxu0 0.0
        %568 = vmatprep.subr.mxu0 0.0
        %569 = vmatpush1.msra.mxu0 0.0
        %570 = vmatprep.subr.mxu0 0.0
        %571 = vmatpush1.msra.mxu0 0.0
        %572 = vmatprep.subr.mxu0 0.0
        %573 = vmatpush1.msra.mxu0 0.0
        %574 = vmatprep.subr.mxu0 0.0
        %575 = vmatpush1.msra.mxu0 0.0
        %576 = vmatprep.subr.mxu0 0.0
        %577 = vmatpush1.msra.mxu0 %v536
        %578 = vmatprep.subr.mxu0 0.0
        %579 = vmatpush1.msra.mxu0 %v535
        %580 = vmatprep.subr.mxu0 0.0
        %581 = vmatpush2.msra.mxu0 0.0
        %582 = vmatprep.subr.mxu0 0.0
        %583 = vmatpush2.msra.mxu0 0.0
        %584 = vmatprep.subr.mxu0 0.0
        %585 = vmatpush2.msra.mxu0 0.0
        %586 = vmatprep.subr.mxu0 0.0
        %587 = vmatpush2.msra.mxu0 0.0
        %588 = vmatprep.subr.mxu0 0.0
        %589 = vmatpush2.msra.mxu0 0.0
        %590 = vmatprep.subr.mxu0 0.0
        %591 = vmatpush2.msra.mxu0 0.0
        %592 = vmatprep.subr.mxu0 0.0
        %593 = vmatpush2.msra.mxu0 0.0
        %594 = vmatprep.subr.mxu0 0.0
        %595 = vmatpush2.msra.mxu0 0.0
        %596 = vmatprep.subr.mxu0 0.0
        %597 = vmatpush2.msra.mxu0 0.0
        %598 = vmatprep.subr.mxu0 0.0
        %599 = vmatpush2.msra.mxu0 0.0
        %600 = vmatprep.subr.mxu0 0.0
        %601 = vmatpush2.msra.mxu0 0.0
        %602 = vmatprep.subr.mxu0 0.0
        %603 = vmatpush2.msra.mxu0 0.0
        %604 = vmatprep.subr.mxu0 0.0
        %605 = vmatpush2.msra.mxu0 0.0
        %606 = vmatprep.subr.mxu0 0.0
        %607 = vmatpush2.msra.mxu0 0.0
        %608 = vmatprep.subr.mxu0 0.0
        %609 = vmatpush2.msra.mxu0 0.0
        %610 = vmatprep.subr.mxu0 0.0
        %611 = vmatpush2.msra.mxu0 0.0
        %612 = vmatprep.mubr.f32.mxu0 0.0
        %613 = vmatmul.mubr.f32.gmra.mxu0 %v367
        %v614 = vpop.f32.mrf.mxu0
        %v615 = vadd.f32 0.0, %v614
        %v616 = vpop.f32.mrf.mxu0
        %617 = vmatprep.mubr.f32.mxu0 0.0
        %618 = vmatmul.mubr.f32.gmra.mxu0 %v370
        %v619 = vpop.f32.mrf.mxu0
        %v620 = vadd.f32 0.0, %v619
        %v621 = vpop.f32.mrf.mxu0
        %622 = vdwg.mxu0
        %v623 = vmul.f32 %v615, 2.0
        %v624 = vmul.f32 %v620, 2.0
        %v625 = vsub.f32 %v623, %v439
        %v626 = vsub.f32 %v624, %v444
        %629 = vrot.lane.b32.xlu0 %v625, 96
        %v630 = vpop.permute.xlu0 %629
        %631 = vrot.lane.b32.xlu0 %v626, 96
        %v632 = vpop.permute.xlu0 %631
        %vm635 = vcmask 1048320
        %636 = vst.msk [vmem:[#allocation2] sm:$0xff] %vm635, %v630
        %637 = vst.msk [vmem:[#allocation2 + $0x8] sm:$0xff] %vm635, %v632
        %v638 = vld [vmem:[#allocation2] sm:$0xff]
        %v639 = vld [vmem:[#allocation2 + $0x8] sm:$0xff]
        %v640 = vld [vmem:[%s2] sm:$0xff]
        %v641 = vld [vmem:[%s2 + $0x8] sm:$0xff]
        %v642 = vld [vmem:[%s2 + $0x10] sm:$0xff]
        %v643 = vld [vmem:[%s2 + $0x18] sm:$0xff]
        %v644 = vld [vmem:[%s2 + $0x20] sm:$0xff]
        %v645 = vld [vmem:[%s2 + $0x28] sm:$0xff]
        %v646 = vld [vmem:[%s2 + $0x30] sm:$0xff]
        %v647 = vld [vmem:[%s2 + $0x38] sm:$0xff]
        %v648 = vld [vmem:[%s2 + $0x40] sm:$0xff]
        %v649 = vld [vmem:[%s2 + $0x48] sm:$0xff]
        %v650 = vld [vmem:[%s2 + $0x50] sm:$0xff]
        %v651 = vld [vmem:[%s2 + $0x58] sm:$0xff]
        %v652 = vld [vmem:[%s2 + $0x60] sm:$0xff]
        %v653 = vld [vmem:[%s2 + $0x68] sm:$0xff]
        %v654 = vld [vmem:[%s2 + $0x70] sm:$0xff]
        %v655 = vld [vmem:[%s2 + $0x78] sm:$0xff]
        %v656 = vld [vmem:[%s3] sm:$0x1]
        %v658 = vlaneseq
        %v659 = vshrl.u32 %v658, 7
        %v660 = vsub.s32 0, %v659
        %v661 = vrot.slane %v656, %v660
        %663 = vmatprep.subr.mxu0 0.0
        %664 = vmatpush1.msra.mxu0 %v655
        %665 = vmatprep.subr.mxu0 0.0
        %666 = vmatpush1.msra.mxu0 %v654
        %667 = vmatprep.subr.mxu0 0.0
        %668 = vmatpush1.msra.mxu0 %v653
        %669 = vmatprep.subr.mxu0 0.0
        %670 = vmatpush1.msra.mxu0 %v652
        %671 = vmatprep.subr.mxu0 0.0
        %672 = vmatpush1.msra.mxu0 %v651
        %673 = vmatprep.subr.mxu0 0.0
        %674 = vmatpush1.msra.mxu0 %v650
        %675 = vmatprep.subr.mxu0 0.0
        %676 = vmatpush1.msra.mxu0 %v649
        %677 = vmatprep.subr.mxu0 0.0
        %678 = vmatpush1.msra.mxu0 %v648
        %679 = vmatprep.subr.mxu0 0.0
        %680 = vmatpush1.msra.mxu0 %v647
        %681 = vmatprep.subr.mxu0 0.0
        %682 = vmatpush1.msra.mxu0 %v646
        %683 = vmatprep.subr.mxu0 0.0
        %684 = vmatpush1.msra.mxu0 %v645
        %685 = vmatprep.subr.mxu0 0.0
        %686 = vmatpush1.msra.mxu0 %v644
        %687 = vmatprep.subr.mxu0 0.0
        %688 = vmatpush1.msra.mxu0 %v643
        %689 = vmatprep.subr.mxu0 0.0
        %690 = vmatpush1.msra.mxu0 %v642
        %691 = vmatprep.subr.mxu0 0.0
        %692 = vmatpush1.msra.mxu0 %v641
        %693 = vmatprep.subr.mxu0 0.0
        %694 = vmatpush1.msra.mxu0 %v640
        %695 = vmatprep.subr.mxu0 0.0
        %696 = vmatpush2.msra.mxu0 0.0
        %697 = vmatprep.subr.mxu0 0.0
        %698 = vmatpush2.msra.mxu0 0.0
        %699 = vmatprep.subr.mxu0 0.0
        %700 = vmatpush2.msra.mxu0 0.0
        %701 = vmatprep.subr.mxu0 0.0
        %702 = vmatpush2.msra.mxu0 0.0
        %703 = vmatprep.subr.mxu0 0.0
        %704 = vmatpush2.msra.mxu0 0.0
        %705 = vmatprep.subr.mxu0 0.0
        %706 = vmatpush2.msra.mxu0 0.0
        %707 = vmatprep.subr.mxu0 0.0
        %708 = vmatpush2.msra.mxu0 0.0
        %709 = vmatprep.subr.mxu0 0.0
        %710 = vmatpush2.msra.mxu0 0.0
        %711 = vmatprep.subr.mxu0 0.0
        %712 = vmatpush2.msra.mxu0 0.0
        %713 = vmatprep.subr.mxu0 0.0
        %714 = vmatpush2.msra.mxu0 0.0
        %715 = vmatprep.subr.mxu0 0.0
        %716 = vmatpush2.msra.mxu0 0.0
        %717 = vmatprep.subr.mxu0 0.0
        %718 = vmatpush2.msra.mxu0 0.0
        %719 = vmatprep.subr.mxu0 0.0
        %720 = vmatpush2.msra.mxu0 0.0
        %721 = vmatprep.subr.mxu0 0.0
        %722 = vmatpush2.msra.mxu0 0.0
        %723 = vmatprep.subr.mxu0 0.0
        %724 = vmatpush2.msra.mxu0 0.0
        %725 = vmatprep.subr.mxu0 0.0
        %726 = vmatpush2.msra.mxu0 0.0
        %727 = vmatprep.mubr.f32.mxu0 0.0
        %728 = vmatmul.mubr.f32.gmra.mxu0 %v638
        %v729 = vpop.f32.mrf.mxu0
        %v730 = vadd.f32 %v661, %v729
        %v731 = vpop.f32.mrf.mxu0
        %732 = vmatprep.mubr.f32.mxu0 0.0
        %733 = vmatmul.mubr.f32.gmra.mxu0 %v639
        %v734 = vpop.f32.mrf.mxu0
        %v735 = vadd.f32 %v661, %v734
        %v736 = vpop.f32.mrf.mxu0
        %737 = vdwg.mxu0
        %v738 = vsel %vm362, %v730, 0.0
        %739 = vadd.xlane.f32.xlu0 %v738
        %v740 = vpop.xlane.xlu0 %739
        %v741 = vsel %vm362, %v735, 0.0
        %742 = vadd.xlane.f32.xlu0 %v741
        %v743 = vpop.xlane.xlu0 %742
        %v744 = vrcp.pop 32.0
        %v745 = vmul.f32 %v740, %v744
        %v746 = vmul.f32 %v743, %v744
        %v747 = vsub.f32 %v730, %v745
        %v748 = vsub.f32 %v735, %v746
        %v749 = vmul.f32 %v747, %v747
        %v750 = vmul.f32 %v748, %v748
        %v751 = vsel %vm362, %v749, 0.0
        %752 = vadd.xlane.f32.xlu0 %v751
        %v753 = vpop.xlane.xlu0 %752
        %v754 = vsel %vm362, %v750, 0.0
        %755 = vadd.xlane.f32.xlu0 %v754
        %v756 = vpop.xlane.xlu0 %755
        %v757 = vmul.f32 %v753, %v744
        %v758 = vmul.f32 %v756, %v744
        %v759 = vadd.f32 %v757, 1e-05
        %v760 = vadd.f32 %v758, 1e-05
        %v761 = vrsqrt.pop %v759
        %v762 = vrsqrt.pop %v760
        %v763 = vmul.f32 %v747, %v761
        %v764 = vmul.f32 %v748, %v762
        %v765 = vld [vmem:[%s4] sm:$0x1]
        %v767 = vlaneseq
        %v768 = vshrl.u32 %v767, 7
        %v769 = vsub.s32 0, %v768
        %v770 = vrot.slane %v765, %v769
        %v772 = vmul.f32 %v763, %v770
        %v773 = vmul.f32 %v764, %v770
        %v774 = vld [vmem:[%s5] sm:$0x1]
        %v776 = vlaneseq
        %v777 = vshrl.u32 %v776, 7
        %v778 = vsub.s32 0, %v777
        %v779 = vrot.slane %v774, %v778
        %v781 = vadd.f32 %v772, %v779
        %v782 = vadd.f32 %v773, %v779
        %v783 = vmax.f32 %v781, 0.0
        %v784 = vmax.f32 %v782, 0.0
        %785 = vst.msk [vmem:[#allocation2] sm:$0xff] %vm362, %v783
        %786 = vst.msk [vmem:[#allocation2 + $0x8] sm:$0xff] %vm362, %v784
        %787 = vmatprep.subr.mxu0 0.0
        %788 = vmatpush1.msra.mxu0 0.0
        %789 = vmatprep.subr.mxu0 0.0
        %790 = vmatpush1.msra.mxu0 0.0
        %791 = vmatprep.subr.mxu0 0.0
        %792 = vmatpush1.msra.mxu0 0.0
        %793 = vmatprep.subr.mxu0 0.0
        %794 = vmatpush1.msra.mxu0 0.0
        %795 = vmatprep.subr.mxu0 0.0
        %796 = vmatpush1.msra.mxu0 0.0
        %797 = vmatprep.subr.mxu0 0.0
        %798 = vmatpush1.msra.mxu0 0.0
        %799 = vmatprep.subr.mxu0 0.0
        %800 = vmatpush1.msra.mxu0 0.0
        %801 = vmatprep.subr.mxu0 0.0
        %802 = vmatpush1.msra.mxu0 0.0
        %803 = vmatprep.subr.mxu0 0.0
        %804 = vmatpush1.msra.mxu0 0.0
        %805 = vmatprep.subr.mxu0 0.0
        %806 = vmatpush1.msra.mxu0 0.0
        %807 = vmatprep.subr.mxu0 0.0
        %808 = vmatpush1.msra.mxu0 0.0
        %809 = vmatprep.subr.mxu0 0.0
        %810 = vmatpush1.msra.mxu0 0.0
        %811 = vmatprep.subr.mxu0 0.0
        %812 = vmatpush1.msra.mxu0 0.0
        %813 = vmatprep.subr.mxu0 0.0
        %814 = vmatpush1.msra.mxu0 0.0
        %815 = vmatprep.subr.mxu0 0.0
        %816 = vmatpush1.msra.mxu0 %v784
        %817 = vmatprep.subr.mxu0 0.0
        %818 = vmatpush1.msra.mxu0 %v783
        %819 = vmatprep.subr.mxu0 0.0
        %820 = vmatpush2.msra.mxu0 0.0
        %821 = vmatprep.subr.mxu0 0.0
        %822 = vmatpush2.msra.mxu0 0.0
        %823 = vmatprep.subr.mxu0 0.0
        %824 = vmatpush2.msra.mxu0 0.0
        %825 = vmatprep.subr.mxu0 0.0
        %826 = vmatpush2.msra.mxu0 0.0
        %827 = vmatprep.subr.mxu0 0.0
        %828 = vmatpush2.msra.mxu0 0.0
        %829 = vmatprep.subr.mxu0 0.0
        %830 = vmatpush2.msra.mxu0 0.0
        %831 = vmatprep.subr.mxu0 0.0
        %832 = vmatpush2.msra.mxu0 0.0
        %833 = vmatprep.subr.mxu0 0.0
        %834 = vmatpush2.msra.mxu0 0.0
        %835 = vmatprep.subr.mxu0 0.0
        %836 = vmatpush2.msra.mxu0 0.0
        %837 = vmatprep.subr.mxu0 0.0
        %838 = vmatpush2.msra.mxu0 0.0
        %839 = vmatprep.subr.mxu0 0.0
        %840 = vmatpush2.msra.mxu0 0.0
        %841 = vmatprep.subr.mxu0 0.0
        %842 = vmatpush2.msra.mxu0 0.0
        %843 = vmatprep.subr.mxu0 0.0
        %844 = vmatpush2.msra.mxu0 0.0
        %845 = vmatprep.subr.mxu0 0.0
        %846 = vmatpush2.msra.mxu0 0.0
        %847 = vmatprep.subr.mxu0 0.0
        %848 = vmatpush2.msra.mxu0 0.0
        %849 = vmatprep.subr.mxu0 0.0
        %850 = vmatpush2.msra.mxu0 0.0
        %851 = vmatprep.mubr.f32.mxu0 0.0
        %852 = vmatmul.mubr.f32.gmra.mxu0 %v367
        %v853 = vpop.f32.mrf.mxu0
        %v854 = vadd.f32 0.0, %v853
        %v855 = vpop.f32.mrf.mxu0
        %856 = vmatprep.mubr.f32.mxu0 0.0
        %857 = vmatmul.mubr.f32.gmra.mxu0 %v370
        %v858 = vpop.f32.mrf.mxu0
        %v859 = vadd.f32 0.0, %v858
        %v860 = vpop.f32.mrf.mxu0
        %861 = vdwg.mxu0
        %864 = vrot.lane.b32.xlu0 %v854, 32
        %v865 = vpop.permute.xlu0 %864
        %866 = vrot.lane.b32.xlu0 %v859, 32
        %v867 = vpop.permute.xlu0 %866
        %870 = vst.msk [vmem:[#allocation2] sm:$0xff] %vm455, %v865
        %871 = vst.msk [vmem:[#allocation2 + $0x8] sm:$0xff] %vm455, %v867
        %872 = vmatprep.subr.mxu0 0.0
        %873 = vmatpush1.msra.mxu0 0.0
        %874 = vmatprep.subr.mxu0 0.0
        %875 = vmatpush1.msra.mxu0 0.0
        %876 = vmatprep.subr.mxu0 0.0
        %877 = vmatpush1.msra.mxu0 0.0
        %878 = vmatprep.subr.mxu0 0.0
        %879 = vmatpush1.msra.mxu0 0.0
        %880 = vmatprep.subr.mxu0 0.0
        %881 = vmatpush1.msra.mxu0 0.0
        %882 = vmatprep.subr.mxu0 0.0
        %883 = vmatpush1.msra.mxu0 0.0
        %884 = vmatprep.subr.mxu0 0.0
        %885 = vmatpush1.msra.mxu0 0.0
        %886 = vmatprep.subr.mxu0 0.0
        %887 = vmatpush1.msra.mxu0 0.0
        %888 = vmatprep.subr.mxu0 0.0
        %889 = vmatpush1.msra.mxu0 0.0
        %890 = vmatprep.subr.mxu0 0.0
        %891 = vmatpush1.msra.mxu0 0.0
        %892 = vmatprep.subr.mxu0 0.0
        %893 = vmatpush1.msra.mxu0 0.0
        %894 = vmatprep.subr.mxu0 0.0
        %895 = vmatpush1.msra.mxu0 0.0
        %896 = vmatprep.subr.mxu0 0.0
        %897 = vmatpush1.msra.mxu0 0.0
        %898 = vmatprep.subr.mxu0 0.0
        %899 = vmatpush1.msra.mxu0 0.0
        %900 = vmatprep.subr.mxu0 0.0
        %901 = vmatpush1.msra.mxu0 %v859
        %902 = vmatprep.subr.mxu0 0.0
        %903 = vmatpush1.msra.mxu0 %v854
        %904 = vmatprep.subr.mxu0 0.0
        %905 = vmatpush2.msra.mxu0 0.0
        %906 = vmatprep.subr.mxu0 0.0
        %907 = vmatpush2.msra.mxu0 0.0
        %908 = vmatprep.subr.mxu0 0.0
        %909 = vmatpush2.msra.mxu0 0.0
        %910 = vmatprep.subr.mxu0 0.0
        %911 = vmatpush2.msra.mxu0 0.0
        %912 = vmatprep.subr.mxu0 0.0
        %913 = vmatpush2.msra.mxu0 0.0
        %914 = vmatprep.subr.mxu0 0.0
        %915 = vmatpush2.msra.mxu0 0.0
        %916 = vmatprep.subr.mxu0 0.0
        %917 = vmatpush2.msra.mxu0 0.0
        %918 = vmatprep.subr.mxu0 0.0
        %919 = vmatpush2.msra.mxu0 0.0
        %920 = vmatprep.subr.mxu0 0.0
        %921 = vmatpush2.msra.mxu0 0.0
        %922 = vmatprep.subr.mxu0 0.0
        %923 = vmatpush2.msra.mxu0 0.0
        %924 = vmatprep.subr.mxu0 0.0
        %925 = vmatpush2.msra.mxu0 0.0
        %926 = vmatprep.subr.mxu0 0.0
        %927 = vmatpush2.msra.mxu0 0.0
        %928 = vmatprep.subr.mxu0 0.0
        %929 = vmatpush2.msra.mxu0 0.0
        %930 = vmatprep.subr.mxu0 0.0
        %931 = vmatpush2.msra.mxu0 0.0
        %932 = vmatprep.subr.mxu0 0.0
        %933 = vmatpush2.msra.mxu0 0.0
        %934 = vmatprep.subr.mxu0 0.0
        %935 = vmatpush2.msra.mxu0 0.0
        %936 = vmatprep.mubr.f32.mxu0 0.0
        %937 = vmatmul.mubr.f32.gmra.mxu0 %v367
        %v938 = vpop.f32.mrf.mxu0
        %v939 = vadd.f32 0.0, %v938
        %v940 = vpop.f32.mrf.mxu0
        %941 = vmatprep.mubr.f32.mxu0 0.0
        %942 = vmatmul.mubr.f32.gmra.mxu0 %v370
        %v943 = vpop.f32.mrf.mxu0
        %v944 = vadd.f32 0.0, %v943
        %v945 = vpop.f32.mrf.mxu0
        %946 = vdwg.mxu0
        %v947 = vmul.f32 %v939, 2.0
        %v948 = vmul.f32 %v944, 2.0
        %v949 = vsub.f32 %v947, %v783
        %v950 = vsub.f32 %v948, %v784
        %953 = vrot.lane.b32.xlu0 %v949, 64
        %v954 = vpop.permute.xlu0 %953
        %955 = vrot.lane.b32.xlu0 %v950, 64
        %v956 = vpop.permute.xlu0 %955
        %959 = vst.msk [vmem:[#allocation2] sm:$0xff] %vm545, %v954
        %960 = vst.msk [vmem:[#allocation2 + $0x8] sm:$0xff] %vm545, %v956
        %961 = vmatprep.subr.mxu0 0.0
        %962 = vmatpush1.msra.mxu0 0.0
        %963 = vmatprep.subr.mxu0 0.0
        %964 = vmatpush1.msra.mxu0 0.0
        %965 = vmatprep.subr.mxu0 0.0
        %966 = vmatpush1.msra.mxu0 0.0
        %967 = vmatprep.subr.mxu0 0.0
        %968 = vmatpush1.msra.mxu0 0.0
        %969 = vmatprep.subr.mxu0 0.0
        %970 = vmatpush1.msra.mxu0 0.0
        %971 = vmatprep.subr.mxu0 0.0
        %972 = vmatpush1.msra.mxu0 0.0
        %973 = vmatprep.subr.mxu0 0.0
        %974 = vmatpush1.msra.mxu0 0.0
        %975 = vmatprep.subr.mxu0 0.0
        %976 = vmatpush1.msra.mxu0 0.0
        %977 = vmatprep.subr.mxu0 0.0
        %978 = vmatpush1.msra.mxu0 0.0
        %979 = vmatprep.subr.mxu0 0.0
        %980 = vmatpush1.msra.mxu0 0.0
        %981 = vmatprep.subr.mxu0 0.0
        %982 = vmatpush1.msra.mxu0 0.0
        %983 = vmatprep.subr.mxu0 0.0
        %984 = vmatpush1.msra.mxu0 0.0
        %985 = vmatprep.subr.mxu0 0.0
        %986 = vmatpush1.msra.mxu0 0.0
        %987 = vmatprep.subr.mxu0 0.0
        %988 = vmatpush1.msra.mxu0 0.0
        %989 = vmatprep.subr.mxu0 0.0
        %990 = vmatpush1.msra.mxu0 %v950
        %991 = vmatprep.subr.mxu0 0.0
        %992 = vmatpush1.msra.mxu0 %v949
        %993 = vmatprep.subr.mxu0 0.0
        %994 = vmatpush2.msra.mxu0 0.0
        %995 = vmatprep.subr.mxu0 0.0
        %996 = vmatpush2.msra.mxu0 0.0
        %997 = vmatprep.subr.mxu0 0.0
        %998 = vmatpush2.msra.mxu0 0.0
        %999 = vmatprep.subr.mxu0 0.0
        %1000 = vmatpush2.msra.mxu0 0.0
        %1001 = vmatprep.subr.mxu0 0.0
        %1002 = vmatpush2.msra.mxu0 0.0
        %1003 = vmatprep.subr.mxu0 0.0
        %1004 = vmatpush2.msra.mxu0 0.0
        %1005 = vmatprep.subr.mxu0 0.0
        %1006 = vmatpush2.msra.mxu0 0.0
        %1007 = vmatprep.subr.mxu0 0.0
        %1008 = vmatpush2.msra.mxu0 0.0
        %1009 = vmatprep.subr.mxu0 0.0
        %1010 = vmatpush2.msra.mxu0 0.0
        %1011 = vmatprep.subr.mxu0 0.0
        %1012 = vmatpush2.msra.mxu0 0.0
        %1013 = vmatprep.subr.mxu0 0.0
        %1014 = vmatpush2.msra.mxu0 0.0
        %1015 = vmatprep.subr.mxu0 0.0
        %1016 = vmatpush2.msra.mxu0 0.0
        %1017 = vmatprep.subr.mxu0 0.0
        %1018 = vmatpush2.msra.mxu0 0.0
        %1019 = vmatprep.subr.mxu0 0.0
        %1020 = vmatpush2.msra.mxu0 0.0
        %1021 = vmatprep.subr.mxu0 0.0
        %1022 = vmatpush2.msra.mxu0 0.0
        %1023 = vmatprep.subr.mxu0 0.0
        %1024 = vmatpush2.msra.mxu0 0.0
        %1025 = vmatprep.mubr.f32.mxu0 0.0
        %1026 = vmatmul.mubr.f32.gmra.mxu0 %v367
        %v1027 = vpop.f32.mrf.mxu0
        %v1028 = vadd.f32 0.0, %v1027
        %v1029 = vpop.f32.mrf.mxu0
        %1030 = vmatprep.mubr.f32.mxu0 0.0
        %1031 = vmatmul.mubr.f32.gmra.mxu0 %v370
        %v1032 = vpop.f32.mrf.mxu0
        %v1033 = vadd.f32 0.0, %v1032
        %v1034 = vpop.f32.mrf.mxu0
        %1035 = vdwg.mxu0
        %v1036 = vmul.f32 %v1028, 2.0
        %v1037 = vmul.f32 %v1033, 2.0
        %v1038 = vsub.f32 %v1036, %v854
        %v1039 = vsub.f32 %v1037, %v859
        %1042 = vrot.lane.b32.xlu0 %v1038, 96
        %v1043 = vpop.permute.xlu0 %1042
        %1044 = vrot.lane.b32.xlu0 %v1039, 96
        %v1045 = vpop.permute.xlu0 %1044
        %1048 = vst.msk [vmem:[#allocation2] sm:$0xff] %vm635, %v1043
        %1049 = vst.msk [vmem:[#allocation2 + $0x8] sm:$0xff] %vm635, %v1045
        %v1050 = vld [vmem:[#allocation2] sm:$0xff]
        %v1051 = vld [vmem:[#allocation2 + $0x8] sm:$0xff]
        %v1052 = vld [vmem:[%s6] sm:$0xff]
        %v1053 = vld [vmem:[%s6 + $0x8] sm:$0xff]
        %v1054 = vld [vmem:[%s6 + $0x10] sm:$0xff]
        %v1055 = vld [vmem:[%s6 + $0x18] sm:$0xff]
        %v1056 = vld [vmem:[%s6 + $0x20] sm:$0xff]
        %v1057 = vld [vmem:[%s6 + $0x28] sm:$0xff]
        %v1058 = vld [vmem:[%s6 + $0x30] sm:$0xff]
        %v1059 = vld [vmem:[%s6 + $0x38] sm:$0xff]
        %v1060 = vld [vmem:[%s6 + $0x40] sm:$0xff]
        %v1061 = vld [vmem:[%s6 + $0x48] sm:$0xff]
        %v1062 = vld [vmem:[%s6 + $0x50] sm:$0xff]
        %v1063 = vld [vmem:[%s6 + $0x58] sm:$0xff]
        %v1064 = vld [vmem:[%s6 + $0x60] sm:$0xff]
        %v1065 = vld [vmem:[%s6 + $0x68] sm:$0xff]
        %v1066 = vld [vmem:[%s6 + $0x70] sm:$0xff]
        %v1067 = vld [vmem:[%s6 + $0x78] sm:$0xff]
        %v1068 = vld [vmem:[%s7] sm:$0x1]
        %v1070 = vlaneseq
        %v1071 = vshrl.u32 %v1070, 7
        %v1072 = vsub.s32 0, %v1071
        %v1073 = vrot.slane %v1068, %v1072
        %1075 = vmatprep.subr.mxu0 0.0
        %1076 = vmatpush1.msra.mxu0 %v1067
        %1077 = vmatprep.subr.mxu0 0.0
        %1078 = vmatpush1.msra.mxu0 %v1066
        %1079 = vmatprep.subr.mxu0 0.0
        %1080 = vmatpush1.msra.mxu0 %v1065
        %1081 = vmatprep.subr.mxu0 0.0
        %1082 = vmatpush1.msra.mxu0 %v1064
        %1083 = vmatprep.subr.mxu0 0.0
        %1084 = vmatpush1.msra.mxu0 %v1063
        %1085 = vmatprep.subr.mxu0 0.0
        %1086 = vmatpush1.msra.mxu0 %v1062
        %1087 = vmatprep.subr.mxu0 0.0
        %1088 = vmatpush1.msra.mxu0 %v1061
        %1089 = vmatprep.subr.mxu0 0.0
        %1090 = vmatpush1.msra.mxu0 %v1060
        %1091 = vmatprep.subr.mxu0 0.0
        %1092 = vmatpush1.msra.mxu0 %v1059
        %1093 = vmatprep.subr.mxu0 0.0
        %1094 = vmatpush1.msra.mxu0 %v1058
        %1095 = vmatprep.subr.mxu0 0.0
        %1096 = vmatpush1.msra.mxu0 %v1057
        %1097 = vmatprep.subr.mxu0 0.0
        %1098 = vmatpush1.msra.mxu0 %v1056
        %1099 = vmatprep.subr.mxu0 0.0
        %1100 = vmatpush1.msra.mxu0 %v1055
        %1101 = vmatprep.subr.mxu0 0.0
        %1102 = vmatpush1.msra.mxu0 %v1054
        %1103 = vmatprep.subr.mxu0 0.0
        %1104 = vmatpush1.msra.mxu0 %v1053
        %1105 = vmatprep.subr.mxu0 0.0
        %1106 = vmatpush1.msra.mxu0 %v1052
        %1107 = vmatprep.subr.mxu0 0.0
        %1108 = vmatpush2.msra.mxu0 0.0
        %1109 = vmatprep.subr.mxu0 0.0
        %1110 = vmatpush2.msra.mxu0 0.0
        %1111 = vmatprep.subr.mxu0 0.0
        %1112 = vmatpush2.msra.mxu0 0.0
        %1113 = vmatprep.subr.mxu0 0.0
        %1114 = vmatpush2.msra.mxu0 0.0
        %1115 = vmatprep.subr.mxu0 0.0
        %1116 = vmatpush2.msra.mxu0 0.0
        %1117 = vmatprep.subr.mxu0 0.0
        %1118 = vmatpush2.msra.mxu0 0.0
        %1119 = vmatprep.subr.mxu0 0.0
        %1120 = vmatpush2.msra.mxu0 0.0
        %1121 = vmatprep.subr.mxu0 0.0
        %1122 = vmatpush2.msra.mxu0 0.0
        %1123 = vmatprep.subr.mxu0 0.0
        %1124 = vmatpush2.msra.mxu0 0.0
        %1125 = vmatprep.subr.mxu0 0.0
        %1126 = vmatpush2.msra.mxu0 0.0
        %1127 = vmatprep.subr.mxu0 0.0
        %1128 = vmatpush2.msra.mxu0 0.0
        %1129 = vmatprep.subr.mxu0 0.0
        %1130 = vmatpush2.msra.mxu0 0.0
        %1131 = vmatprep.subr.mxu0 0.0
        %1132 = vmatpush2.msra.mxu0 0.0
        %1133 = vmatprep.subr.mxu0 0.0
        %1134 = vmatpush2.msra.mxu0 0.0
        %1135 = vmatprep.subr.mxu0 0.0
        %1136 = vmatpush2.msra.mxu0 0.0
        %1137 = vmatprep.subr.mxu0 0.0
        %1138 = vmatpush2.msra.mxu0 0.0
        %1139 = vmatprep.mubr.f32.mxu0 0.0
        %1140 = vmatmul.mubr.f32.gmra.mxu0 %v1050
        %v1141 = vpop.f32.mrf.mxu0
        %v1142 = vadd.f32 %v1073, %v1141
        %v1143 = vpop.f32.mrf.mxu0
        %1144 = vmatprep.mubr.f32.mxu0 0.0
        %1145 = vmatmul.mubr.f32.gmra.mxu0 %v1051
        %v1146 = vpop.f32.mrf.mxu0
        %v1147 = vadd.f32 %v1073, %v1146
        %v1148 = vpop.f32.mrf.mxu0
        %1149 = vdwg.mxu0
        %v1150 = vsel %vm365, %v1142, 0.0
        %1151 = vadd.xlane.f32.xlu0 %v1150
        %v1152 = vpop.xlane.xlu0 %1151
        %v1153 = vsel %vm365, %v1147, 0.0
        %1154 = vadd.xlane.f32.xlu0 %v1153
        %v1155 = vpop.xlane.xlu0 %1154
        %v1156 = vrcp.pop 16.0
        %v1157 = vmul.f32 %v1152, %v1156
        %v1158 = vmul.f32 %v1155, %v1156
        %v1159 = vsub.f32 %v1142, %v1157
        %v1160 = vsub.f32 %v1147, %v1158
        %v1161 = vmul.f32 %v1159, %v1159
        %v1162 = vmul.f32 %v1160, %v1160
        %v1163 = vsel %vm365, %v1161, 0.0
        %1164 = vadd.xlane.f32.xlu0 %v1163
        %v1165 = vpop.xlane.xlu0 %1164
        %v1166 = vsel %vm365, %v1162, 0.0
        %1167 = vadd.xlane.f32.xlu0 %v1166
        %v1168 = vpop.xlane.xlu0 %1167
        %v1169 = vmul.f32 %v1165, %v1156
        %v1170 = vmul.f32 %v1168, %v1156
        %v1171 = vadd.f32 %v1169, 1e-05
        %v1172 = vadd.f32 %v1170, 1e-05
        %v1173 = vrsqrt.pop %v1171
        %v1174 = vrsqrt.pop %v1172
        %v1175 = vmul.f32 %v1159, %v1173
        %v1176 = vmul.f32 %v1160, %v1174
        %v1177 = vld [vmem:[%s8] sm:$0x1]
        %v1179 = vlaneseq
        %v1180 = vshrl.u32 %v1179, 7
        %v1181 = vsub.s32 0, %v1180
        %v1182 = vrot.slane %v1177, %v1181
        %v1184 = vmul.f32 %v1175, %v1182
        %v1185 = vmul.f32 %v1176, %v1182
        %v1186 = vld [vmem:[%s9] sm:$0x1]
        %v1188 = vlaneseq
        %v1189 = vshrl.u32 %v1188, 7
        %v1190 = vsub.s32 0, %v1189
        %v1191 = vrot.slane %v1186, %v1190
        %v1193 = vadd.f32 %v1184, %v1191
        %v1194 = vadd.f32 %v1185, %v1191
        %v1195 = vmax.f32 %v1193, 0.0
        %v1196 = vmax.f32 %v1194, 0.0
        %1197 = vst.msk [vmem:[%s352] sm:$0xff] %vm365, %v1195
        %1198 = vst.msk [vmem:[%s352 + $0x8] sm:$0xff] %vm365, %v1196
        %s1199 = sand.u32 %s247, 1
        %s1200 = scalar_lea.sflag [#allocation4], %s1199
        %s1201 = sand.u32 %s247, 1
        %s1202 = smul.addr %s1201, 16
        %s1203 = scalar_lea.vmem [#allocation3], %s1202
        // Predicated region
        $region61: #{tpu_custom_call.1} parent=59 // pred_check
          %p1204 = pneg %p257
        $region62: #{tpu_custom_call.1} parent=59 // pred_check_branch
          %1206 = sbr.rel (%p1204) target = $region64
        $region63: #{tpu_custom_call.1} parent=59 // pred_region
          %s1208 = ssub.s32 256, 256
          %1209 = vsyncadd %s1200, %s1208
          %s1210 = smul.addr %s24, 2
          %s1211 = smul.addr %s1210, 128
          %s1212 = scalar_lea.hbm %s10, %s1211
          %s1213 = sshll.u32 %s1203, 4
          %s1214 = int_to_ptr.vmem [resolvable:$true] %s1213
          %1219 = dma.vmem_to_hbm [thread:$0]  %s1214, 256, %s1212, %s1200, 128, 128, 8
        $region64: #{tpu_custom_call.1} parent=59 // pred_fallthru
          _
      $region60: #{tpu_custom_call.1} parent=5 // pred_fallthru
        _
      %p1220 = scmp.le.s32.totalorder 2, %s19
      // Predicated region
      $region65: #{tpu_custom_call.1} parent=5 // pred_check
        %p1221 = pneg %p1220
      $region66: #{tpu_custom_call.1} parent=5 // pred_check_branch
        %1223 = sbr.rel (%p1221) target = $region68
      $region67: #{tpu_custom_call.1} parent=5 // pred_region
        %s1224 = ssub.s32 %s19, 2
        // Predicated region
        $region69: #{tpu_custom_call.1} parent=67 // pred_check
          %p1225 = pneg %p263
        $region70: #{tpu_custom_call.1} parent=67 // pred_check_branch
          %1227 = sbr.rel (%p1225) target = $region72
        $region71: #{tpu_custom_call.1} parent=67 // pred_region
          %s1228 = sand.u32 %s248, 1
          %s1229 = scalar_lea.sflag [#allocation4], %s1228
          %s1230 = sand.u32 %s248, 1
          %s1231 = smul.addr %s1230, 16
          %s1232 = scalar_lea.vmem [#allocation3], %s1231
          %1233 = dma.done %s1229, 256
        $region72: #{tpu_custom_call.1} parent=67 // pred_fallthru
          _
      $region68: #{tpu_custom_call.1} parent=5 // pred_fallthru
        _
    $region6: #{tpu_custom_call.1} parent=1 // loop_footer
      %s23 = sadd.s32 1, %s19
    $region7: #{tpu_custom_call.1} parent=1 // loop_footer_branch
      %18 = sbr.rel target = $region3
    $region8: #{tpu_custom_call.1} parent=1 // loop_exit
      _
    %1234 = vsyncpa [#allocation4], 1
    %s1235 = scalar_lea.sflag [#allocation4], 1
    %1236 = vsyncpa %s1235, 1

</llo_original>
